<compile_context>
chip_gen: v5e
topology: v5e:2x2
jax: 0.10.0
libtpu: 0.0.40
codegen_flags: <defaults>
</compile_context>

<pallas_src>
import functools

import jax
import jax.numpy as jnp
from jax.experimental import pallas as pl
from jax.experimental.pallas import tpu as pltpu

# ---- hyperparameters implied by the PyTorch module ----
FILTER_SIZES = [1, 1, 1, 2, 2, 2]   # three k=1 convs, three k=2 convs
MAX_LEN = 8                          # sequence length
EMBED_DIM = 300                      # model__embeddings_dim
NUM_FILTERS = 128
NUM_CLASS = 4                        # small synthetic num_class
VOCAB_SIZE = 64                      # synthetic vocabulary (no .npy/.dic loading)


def _round_up(x, m):
    return (x + m - 1) // m * m


def textcnn_kernel(ids_ref, table_ref, w_ref, wfc_ref, bfc_ref, out_ref):
    """One grid step == TB examples (M = TB*S flattened token rows).

    ids_ref  : (M, 1)   int32 token ids (row m = example m//S, position m%S)
    table_ref: (VP, DP) bf16 embedding table; column D is a constant-1 bias channel
    w_ref    : (DP, 9F) bf16 fused conv weights [k=1 | k=2 tap0 | k=2 tap1];
                        row D carries the conv biases for the k=1 / tap0 columns
    wfc_ref  : (6F, CP) bf16 FC weight, classes lane-padded to CP
    bfc_ref  : (1, CP)  f32 FC bias (lane-padded)
    out_ref  : (TB, CP) f32 logits (lane-dense store; sliced in the wrapper)
    """
    M = ids_ref.shape[0]
    TB = out_ref.shape[0]
    S = M // TB
    VP = table_ref.shape[0]
    f3 = w_ref.shape[1] // 3
    cdt = table_ref.dtype                                    # bf16 MXU operand dtype

    # ---- embedding lookup in-kernel: exact one-hot @ table gather on the MXU ----
    lane_ids = jax.lax.broadcasted_iota(jnp.int32, (M, VP), 1)
    oh = jnp.where(lane_ids == ids_ref[...], 1.0, 0.0).astype(cdt)        # (M, VP)
    emb = jnp.dot(oh, table_ref[...],
                  preferred_element_type=jnp.float32).astype(cdt)          # (M, DP)

    # ---- all six convs (and their biases, via the constant-1 channel) in ONE matmul ----
    z = jnp.dot(emb, w_ref[...], preferred_element_type=jnp.float32)       # (M, 9F)

    # k=2 second tap: value at the NEXT sequence position.  Rotating the flat
    # (M, 3F) slab up by one row (shift = M-1 == roll by -1) does exactly that
    # on the XLU (essentially free).  The only rows that pull data across an
    # example boundary are the S-1 positions, masked to 0 below.
    tap1 = pltpu.roll(z[:, 2 * f3:], shift=M - 1, axis=0)                  # (M, 3F)

    # k=1 convs: relu + max-pool over the sequence axis (bias already in z).
    m1 = z[:, :f3].reshape(TB, S, f3)
    p1 = jnp.max(jnp.maximum(m1, 0.0), axis=1)                             # (TB, 3F)

    # k=2 convs: tap0(s) + tap1(s+1), relu, then mask the invalid position S-1
    # to the relu floor (0 can never win the max), max-pool.
    s2 = jnp.maximum(z[:, f3:2 * f3] + tap1, 0.0).reshape(TB, S, f3)
    valid = jax.lax.broadcasted_iota(jnp.int32, (S, f3), 0) < (S - 1)
    s2 = jnp.where(valid[None, :, :], s2, 0.0)
    p2 = jnp.max(s2, axis=1)                                               # (TB, 3F)

    # ---- concat + dropout(identity in eval) + single FC matmul ----
    # TODO(synk): nn.Dropout(p=0.8) is skipped (inference / eval semantics).
    feats = jnp.concatenate([p1, p2], axis=1).astype(wfc_ref.dtype)        # (TB, 6F)
    out_ref[...] = (jnp.dot(feats, wfc_ref[...], preferred_element_type=jnp.float32)
                    + bfc_ref[...])


def prepack_params(emb_table, conv_ws, conv_bs, wfc, bfc):
    """One-time packing of all parameters into kernel layout (bf16, padded, fused).

    Hoisted out of the per-call forward so repeated forwards do not re-pad /
    re-transpose / re-cast the weights (perf-review item).
    """
    V, D = emb_table.shape
    C = wfc.shape[1]
    F = conv_ws[0].shape[0]
    f3 = 3 * F
    cdt = jnp.bfloat16

    DP = _round_up(D + 1, 128)    # +1 guarantees a spare column for the bias channel
    VP = _round_up(V, 8)
    CP = _round_up(C, 128)        # lane-dense output stores

    # Embedding table, zero-padded, with a constant-1 bias channel at column D.
    table = jnp.zeros((VP, DP), jnp.float32)
    table = table.at[:V, :D].set(emb_table.astype(jnp.float32))
    table = table.at[:V, D].set(1.0)
    table = table.astype(cdt)

    # Fused conv weight (DP, 9F): [k=1 convs | k=2 tap0 | k=2 tap1].
    # conv_ws[i]: (F, k_i, D)  (torch (F,1,k,D) squeezed).  Conv biases live in
    # row D (the constant-1 channel) of the first 6F columns; tap1 columns get none.
    w1 = jnp.concatenate([conv_ws[i][:, 0, :].T for i in (0, 1, 2)], axis=1)   # (D, 3F)
    w2a = jnp.concatenate([conv_ws[i][:, 0, :].T for i in (3, 4, 5)], axis=1)  # k=2 tap0
    w2b = jnp.concatenate([conv_ws[i][:, 1, :].T for i in (3, 4, 5)], axis=1)  # k=2 tap1
    b1 = jnp.concatenate([conv_bs[i] for i in (0, 1, 2)]).astype(jnp.float32)
    b2 = jnp.concatenate([conv_bs[i] for i in (3, 4, 5)]).astype(jnp.float32)
    w_all = jnp.zeros((DP, 3 * f3), jnp.float32)
    w_all = w_all.at[:D, :].set(jnp.concatenate([w1, w2a, w2b], axis=1))
    w_all = w_all.at[D, :f3].set(b1)
    w_all = w_all.at[D, f3:2 * f3].set(b2)
    w_all = w_all.astype(cdt)

    wfc_p = jnp.zeros((2 * f3, CP), jnp.float32).at[:, :C].set(wfc).astype(cdt)
    bfc_p = jnp.zeros((1, CP), jnp.float32).at[0, :C].set(bfc)

    return {"table": table, "w_all": w_all, "wfc": wfc_p, "bfc": bfc_p}


@functools.partial(jax.jit, static_argnames=("num_class", "batch_tile"))
def textcnn_forward(x_tokens, params, *, num_class, batch_tile=128):
    """x_tokens: (B, S) int32; params: output of prepack_params.
    Returns logits (B, num_class) float32."""
    B, S = x_tokens.shape
    table, w_all = params["table"], params["w_all"]
    wfc_p, bfc_p = params["wfc"], params["bfc"]
    VP, DP = table.shape
    f3 = w_all.shape[1] // 3
    CP = wfc_p.shape[1]

    # Batch tiling: each grid step flattens TB examples into M = TB*S token rows
    # (MXU-friendly M; TB=128 -> M=1024).  For real batches keep BP//TB >= 2 so
    # both v7x TensorCores get work via the "parallel" grid axis.
    TB = batch_tile if B >= batch_tile else _round_up(B, 8)
    BP = _round_up(B, TB)
    M = TB * S

    ids = jnp.zeros((BP, S), jnp.int32).at[:B].set(x_tokens.astype(jnp.int32))
    ids_flat = ids.reshape(BP * S, 1)

    # TODO(synk): for a real (tens-of-thousands-row) vocabulary the VMEM-resident
    # one-hot gather does not scale; switch to an HBM-resident (pl.ANY) table with
    # a scalar-prefetch / per-row DMA gather.
    out = pl.pallas_call(
        textcnn_kernel,
        out_shape=jax.ShapeDtypeStruct((BP, CP), jnp.float32),
        grid_spec=pltpu.PrefetchScalarGridSpec(
            num_scalar_prefetch=0,
            grid=(BP // TB,),
            in_specs=[
                pl.BlockSpec((M, 1), lambda b: (b, 0)),          # token ids
                pl.BlockSpec((VP, DP), lambda b: (0, 0)),        # embedding table (VMEM-resident)
                pl.BlockSpec((DP, 3 * f3), lambda b: (0, 0)),    # fused conv weights (+bias row)
                pl.BlockSpec((2 * f3, CP), lambda b: (0, 0)),    # FC weight
                pl.BlockSpec((1, CP), lambda b: (0, 0)),         # FC bias
            ],
            out_specs=pl.BlockSpec((TB, CP), lambda b: (b, 0)),
        ),
        compiler_params=pltpu.CompilerParams(
            dimension_semantics=("parallel",),
            vmem_limit_bytes=32 * 1024 * 1024,   # headroom for TB=128 on v5e's 16MiB default
        ),
    )(ids_flat, table, w_all, wfc_p, bfc_p)

    return out[:B, :num_class]


def reference_forward(x_tokens, emb_table, conv_ws, conv_bs, wfc, bfc):
    """Pure-JAX f32 reference matching the PyTorch forward (eval mode)."""
    emb = emb_table[x_tokens].astype(jnp.float32)                   # (B, S, D)
    S = emb.shape[1]
    pools = []
    for k, W, b in zip(FILTER_SIZES, conv_ws, conv_bs):
        conv = sum(
            jnp.einsum('bsd,fd->bsf', emb[:, dk:S - k + 1 + dk, :], W[:, dk, :])
            for dk in range(k)
        ) + b[None, None, :]                                        # (B, S-k+1, F)
        pools.append(jnp.max(jax.nn.relu(conv), axis=1))            # (B, F)
    cat = jnp.concatenate(pools, axis=-1)                           # (B, 6F)
    return cat @ wfc + bfc[None, :]


if __name__ == "__main__":
    B, S, D, F, C = 2, MAX_LEN, EMBED_DIM, NUM_FILTERS, NUM_CLASS

    key = jax.random.PRNGKey(0)
    keys = jax.random.split(key, 16)

    # Synthetic embedding table (module's uniform(-0.2, 0.2) fallback init).
    emb_table = jax.random.uniform(keys[0], (VOCAB_SIZE, D), jnp.float32, -0.2, 0.2)

    # Conv weights: trunc_normal(std=0.1); biases: small uniform.
    conv_ws, conv_bs = [], []
    for i, k in enumerate(FILTER_SIZES):
        kw, kb = jax.random.split(keys[1 + i])
        w = 0.1 * jax.random.truncated_normal(kw, -2.0, 2.0, (F, k, D), jnp.float32)
        bound = 1.0 / float(k * D) ** 0.5
        b = jax.random.uniform(kb, (F,), jnp.float32, -bound, bound)
        conv_ws.append(w)
        conv_bs.append(b)

    # FC layer (stored pre-transposed as (6F, C)).
    fan_in = F * len(FILTER_SIZES)
    bound = 1.0 / float(fan_in) ** 0.5
    wfc = jax.random.uniform(keys[10], (fan_in, C), jnp.float32, -bound, bound)
    bfc = jax.random.uniform(keys[11], (C,), jnp.float32, -bound, bound)

    # Token ids input, as in the PyTorch forward(x).
    x_tokens = jax.random.randint(keys[12], (B, S), 0, VOCAB_SIZE, dtype=jnp.int32)

    # One-time parameter packing (hoisted out of the per-call forward).
    params = prepack_params(emb_table, conv_ws, conv_bs, wfc, bfc)

    out = textcnn_forward(x_tokens, params, num_class=C)
    out = jax.block_until_ready(out)

    ref = reference_forward(x_tokens, emb_table, conv_ws, conv_bs, wfc, bfc)
    ref = jax.block_until_ready(ref)

    assert out.shape == (B, C), out.shape
    # bf16 weights/embeddings/biases with f32 MXU accumulation -> loosened tolerance.
    assert jnp.allclose(out, ref, rtol=2e-2, atol=2e-2), (out, ref)

    print("KERNEL_OK")
</pallas_src>

<mosaic_0001>
module attributes {stable_mosaic.version = 11 : i64} {
  func.func @textcnn_kernel(%arg0: i32, %arg1: memref<64x1xi32, #tpu.memory_space<vmem>>, %arg2: memref<64x384xbf16, #tpu.memory_space<vmem>>, %arg3: memref<384x1152xbf16, #tpu.memory_space<vmem>>, %arg4: memref<768x128xbf16, #tpu.memory_space<vmem>>, %arg5: memref<1x128xf32, #tpu.memory_space<vmem>>, %arg6: memref<8x128xf32, #tpu.memory_space<vmem>>) attributes {dimension_semantics = [#tpu.dimension_semantics<parallel>], iteration_bounds = array<i64: 1>, scalar_prefetch = 0 : i64, scratch_operands = 0 : i64, tpu.core_type = #tpu.core_type<tc>, window_params = [{transform_indices = @transform_0, window_bounds = array<i64: 64, 1>}, {pipeline_mode = #tpu.pipeline_mode<synchronous>, transform_indices = @transform_1, window_bounds = array<i64: 64, 384>}, {pipeline_mode = #tpu.pipeline_mode<synchronous>, transform_indices = @transform_2, window_bounds = array<i64: 384, 1152>}, {pipeline_mode = #tpu.pipeline_mode<synchronous>, transform_indices = @transform_3, window_bounds = array<i64: 768, 128>}, {pipeline_mode = #tpu.pipeline_mode<synchronous>, transform_indices = @transform_4, window_bounds = array<i64: 1, 128>}, {transform_indices = @transform_5, window_bounds = array<i64: 8, 128>}]} {
    %0 = tpu.iota {dimensions = array<i32: 1>} : vector<64x64xi32>
    %c0 = arith.constant 0 : index
    %c0_0 = arith.constant 0 : index
    %1 = vector.load %arg1[%c0, %c0_0] : memref<64x1xi32, #tpu.memory_space<vmem>>, vector<64x1xi32>
    %2 = vector.broadcast %1 : vector<64x1xi32> to vector<64x64xi32>
    %3 = arith.cmpi eq, %0, %2 : vector<64x64xi32>
    %cst = arith.constant 1.000000e+00 : f32
    %cst_1 = arith.constant 0.000000e+00 : f32
    %4 = vector.broadcast %cst : f32 to vector<64x64xf32>
    %5 = vector.broadcast %cst_1 : f32 to vector<64x64xf32>
    %6 = arith.select %3, %4, %5 : vector<64x64xi1>, vector<64x64xf32>
    %7 = arith.truncf %6 : vector<64x64xf32> to vector<64x64xbf16>
    %c0_2 = arith.constant 0 : index
    %c0_3 = arith.constant 0 : index
    %8 = vector.load %arg2[%c0_2, %c0_3] : memref<64x384xbf16, #tpu.memory_space<vmem>>, vector<64x384xbf16>
    %cst_4 = arith.constant dense<0.000000e+00> : vector<64x384xf32>
    %9 = tpu.matmul %7, %8, %cst_4 {dimension_numbers = #tpu.dot_dimension_numbers<[1], [0], [0], [1], [0, 0, 1, 1], [], []>} : vector<64x64xbf16>, vector<64x384xbf16>, vector<64x384xf32> -> vector<64x384xf32>
    %10 = arith.truncf %9 : vector<64x384xf32> to vector<64x384xbf16>
    %c0_5 = arith.constant 0 : index
    %c0_6 = arith.constant 0 : index
    %11 = vector.load %arg3[%c0_5, %c0_6] : memref<384x1152xbf16, #tpu.memory_space<vmem>>, vector<384x1152xbf16>
    %cst_7 = arith.constant dense<0.000000e+00> : vector<64x1152xf32>
    %12 = tpu.matmul %10, %11, %cst_7 {dimension_numbers = #tpu.dot_dimension_numbers<[1], [0], [0], [1], [0, 0, 1, 1], [], []>} : vector<64x384xbf16>, vector<384x1152xbf16>, vector<64x1152xf32> -> vector<64x1152xf32>
    %13 = vector.extract_strided_slice %12 {offsets = [0, 768], sizes = [64, 384], strides = [1, 1]} : vector<64x1152xf32> to vector<64x384xf32>
    %c63_i32 = arith.constant 63 : i32
    %14 = tpu.dynamic_rotate %13 by %c63_i32 dim 0 : vector<64x384xf32>, i32 -> vector<64x384xf32>
    %15 = vector.extract_strided_slice %12 {offsets = [0, 0], sizes = [64, 384], strides = [1, 1]} : vector<64x1152xf32> to vector<64x384xf32>
    %16 = vector.shape_cast %15 : vector<64x384xf32> to vector<8x8x384xf32>
    %cst_8 = arith.constant 0.000000e+00 : f32
    %17 = vector.broadcast %cst_8 : f32 to vector<8x8x384xf32>
    %18 = arith.maximumf %16, %17 : vector<8x8x384xf32>
    %cst_9 = arith.constant dense<0xFF800000> : vector<8x384xf32>
    %19 = vector.multi_reduction <maximumf>, %18, %cst_9 [1] : vector<8x8x384xf32> to vector<8x384xf32>
    %20 = vector.extract_strided_slice %12 {offsets = [0, 384], sizes = [64, 384], strides = [1, 1]} : vector<64x1152xf32> to vector<64x384xf32>
    %21 = arith.addf %20, %14 : vector<64x384xf32>
    %cst_10 = arith.constant 0.000000e+00 : f32
    %22 = vector.broadcast %cst_10 : f32 to vector<64x384xf32>
    %23 = arith.maximumf %21, %22 : vector<64x384xf32>
    %24 = vector.shape_cast %23 : vector<64x384xf32> to vector<8x8x384xf32>
    %25 = tpu.iota {dimensions = array<i32: 0>} : vector<8x384xi32>
    %c7_i32 = arith.constant 7 : i32
    %26 = vector.broadcast %c7_i32 : i32 to vector<8x384xi32>
    %27 = arith.cmpi slt, %25, %26 : vector<8x384xi32>
    %28 = vector.shape_cast %27 : vector<8x384xi1> to vector<1x8x384xi1>
    %cst_11 = arith.constant 0.000000e+00 : f32
    %29 = vector.shape_cast %28 : vector<1x8x384xi1> to vector<1x8x384xi1>
    %30 = vector.broadcast %29 : vector<1x8x384xi1> to vector<8x8x384xi1>
    %31 = vector.broadcast %cst_11 : f32 to vector<8x8x384xf32>
    %32 = arith.select %30, %24, %31 : vector<8x8x384xi1>, vector<8x8x384xf32>
    %cst_12 = arith.constant dense<0xFF800000> : vector<8x384xf32>
    %33 = vector.multi_reduction <maximumf>, %32, %cst_12 [1] : vector<8x8x384xf32> to vector<8x384xf32>
    %34 = tpu.concatenate %19, %33 in 1 : vector<8x384xf32>, vector<8x384xf32> -> vector<8x768xf32>
    %35 = arith.truncf %34 : vector<8x768xf32> to vector<8x768xbf16>
    %c0_13 = arith.constant 0 : index
    %c0_14 = arith.constant 0 : index
    %36 = vector.load %arg4[%c0_13, %c0_14] : memref<768x128xbf16, #tpu.memory_space<vmem>>, vector<768x128xbf16>
    %cst_15 = arith.constant dense<0.000000e+00> : vector<8x128xf32>
    %37 = tpu.matmul %35, %36, %cst_15 {dimension_numbers = #tpu.dot_dimension_numbers<[1], [0], [0], [1], [0, 0, 1, 1], [], []>} : vector<8x768xbf16>, vector<768x128xbf16>, vector<8x128xf32> -> vector<8x128xf32>
    %c0_16 = arith.constant 0 : index
    %c0_17 = arith.constant 0 : index
    %38 = vector.load %arg5[%c0_16, %c0_17] : memref<1x128xf32, #tpu.memory_space<vmem>>, vector<1x128xf32>
    %39 = vector.broadcast %38 : vector<1x128xf32> to vector<8x128xf32>
    %40 = arith.addf %37, %39 : vector<8x128xf32>
    %c0_18 = arith.constant 0 : index
    %c0_19 = arith.constant 0 : index
    %41 = vector.load %arg6[%c0_18, %c0_19] : memref<8x128xf32, #tpu.memory_space<vmem>>, vector<8x128xf32>
    tpu.vector_store %arg6[%c0_18, %c0_19], %40 {strides = array<i32>} : memref<8x128xf32, #tpu.memory_space<vmem>>, vector<8x128xf32>,
    return
  }
  func.func @transform_0(%arg0: i32) -> (i32, i32) {
    %c0_i32 = arith.constant 0 : i32
    %c0_i32_0 = arith.constant 0 : i32
    return %arg0, %c0_i32 : i32, i32
  }
  func.func @transform_1(%arg0: i32) -> (i32, i32) {
    %c0_i32 = arith.constant 0 : i32
    %c0_i32_0 = arith.constant 0 : i32
    %c0_i32_1 = arith.constant 0 : i32
    return %c0_i32, %c0_i32_0 : i32, i32
  }
  func.func @transform_2(%arg0: i32) -> (i32, i32) {
    %c0_i32 = arith.constant 0 : i32
    %c0_i32_0 = arith.constant 0 : i32
    %c0_i32_1 = arith.constant 0 : i32
    return %c0_i32, %c0_i32_0 : i32, i32
  }
  func.func @transform_3(%arg0: i32) -> (i32, i32) {
    %c0_i32 = arith.constant 0 : i32
    %c0_i32_0 = arith.constant 0 : i32
    %c0_i32_1 = arith.constant 0 : i32
    return %c0_i32, %c0_i32_0 : i32, i32
  }
  func.func @transform_4(%arg0: i32) -> (i32, i32) {
    %c0_i32 = arith.constant 0 : i32
    %c0_i32_0 = arith.constant 0 : i32
    %c0_i32_1 = arith.constant 0 : i32
    return %c0_i32, %c0_i32_0 : i32, i32
  }
  func.func @transform_5(%arg0: i32) -> (i32, i32) {
    %c0_i32 = arith.constant 0 : i32
    %c0_i32_0 = arith.constant 0 : i32
    return %arg0, %c0_i32 : i32, i32
  }
}

</mosaic_0001>

<llo_original>
// kernel: textcnn_forward.1
$region0: #{textcnn_forward.1}
  #allocation0 [shape = 'u32[]', space=smem, size = 0x4, offset = 0x4, fixed_abs, tag = 'smem constant byte address 0x4 - core index']
  #allocation1 [shape = 'u32[72,128]{1,0:T(1,128)}', space=vmem, size = 0x9000, scoped, tag = 'internal scratch']
  %s0 = inlined_call_operand.vmem [shape: s32[64,1], index: 0, kind: input, shape index: {}]
  %s1 = inlined_call_operand.hbm [shape: bf16[64,384], index: 1, kind: input, shape index: {}]
  %s2 = inlined_call_operand.hbm [shape: bf16[384,1152], index: 2, kind: input, shape index: {}]
  %s3 = inlined_call_operand.hbm [shape: bf16[768,128], index: 3, kind: input, shape index: {}]
  %s4 = inlined_call_operand.vmem [shape: f32[1,128], index: 4, kind: input, shape index: {}]
  %s5 = inlined_call_operand.vmem [shape: f32[8,128], index: 5, kind: output, shape index: {}]
  %s6 = sld [smem:[#allocation0]]
  $region42: #{textcnn_forward.1} parent=0
    _
  %s8 = ssub.s32 1, %s6
  %s9 = scalar_select 0, %s8, %s6
  $region1: #{textcnn_forward.1} parent=0
    #allocation2 [shape = 'u8[49152]{0}', space=vmem, size = 0xc000, scoped, tag = 'input window, operand 1, single buffered']
    #allocation3 [shape = 's32[1]{0}', space=sflag, size = 0x4, scoped, tag = 'scoped memory for textcnn_forward.1']
    #allocation4 [shape = 'u8[884736]{0}', space=vmem, size = 0xd8000, scoped, tag = 'input window, operand 2, single buffered']
    #allocation5 [shape = 's32[1]{0}', space=sflag, size = 0x4, scoped, tag = 'scoped memory for textcnn_forward.1']
    #allocation6 [shape = 'u8[196608]{0}', space=vmem, size = 0x30000, scoped, tag = 'input window, operand 3, single buffered']
    %10 = vsyncpa [#allocation3], 0
    %11 = vsyncpa [#allocation5], 0
    // Predicated region
    $region2: #{textcnn_forward.1} parent=1 // pred_check
      _
    $region3: #{textcnn_forward.1} parent=1 // pred_check_branch
      %13 = sbr.rel (0) target = $region5
    $region4: #{textcnn_forward.1} parent=1 // pred_region
      _
    $region5: #{textcnn_forward.1} parent=1 // pred_fallthru
      _
    // Predicated region
    $region6: #{textcnn_forward.1} parent=1 // pred_check
      _
    $region7: #{textcnn_forward.1} parent=1 // pred_check_branch
      %15 = sbr.rel (0) target = $region9
    $region8: #{textcnn_forward.1} parent=1 // pred_region
      %17 = vsyncadd [#allocation3], 0
      %s18 = sshll.u32 %s1, 4
      %s19 = int_to_ptr.hbm [resolvable:$true] %s18
      %s20 = sshll.u32 [#allocation2], 4
      %s21 = int_to_ptr.vmem [resolvable:$true] %s20
      %26 = dma.hbm_to_vmem [thread:$0]  %s19, 1536, %s21, [#allocation3], 192, 192, 12
    $region9: #{textcnn_forward.1} parent=1 // pred_fallthru
      _
    // Predicated region
    $region10: #{textcnn_forward.1} parent=1 // pred_check
      _
    $region11: #{textcnn_forward.1} parent=1 // pred_check_branch
      %28 = sbr.rel (0) target = $region13
    $region12: #{textcnn_forward.1} parent=1 // pred_region
      %30 = vsyncadd [#allocation5], 0
      %s31 = sshll.u32 %s2, 4
      %s32 = int_to_ptr.hbm [resolvable:$true] %s31
      %s33 = sshll.u32 [#allocation4], 4
      %s34 = int_to_ptr.vmem [resolvable:$true] %s33
      %39 = dma.hbm_to_vmem [thread:$0]  %s32, 27648, %s34, [#allocation5], 576, 576, 36
    $region13: #{textcnn_forward.1} parent=1 // pred_fallthru
      _
    // Predicated region
    $region14: #{textcnn_forward.1} parent=1 // pred_check
      _
    $region15: #{textcnn_forward.1} parent=1 // pred_check_branch
      %41 = sbr.rel (0) target = $region17
    $region16: #{textcnn_forward.1} parent=1 // pred_region
      %43 = vsyncadd [#allocation5], 0
      %s44 = sshll.u32 %s3, 4
      %s45 = int_to_ptr.hbm [resolvable:$true] %s44
      %s46 = sshll.u32 [#allocation6], 4
      %s47 = int_to_ptr.vmem [resolvable:$true] %s46
      %52 = dma.hbm_to_vmem [thread:$0]  %s45, 6144, %s47, [#allocation5], 64, 64, 4
    $region17: #{textcnn_forward.1} parent=1 // pred_fallthru
      _
    // Predicated region
    $region18: #{textcnn_forward.1} parent=1 // pred_check
      _
    $region19: #{textcnn_forward.1} parent=1 // pred_check_branch
      %54 = sbr.rel (0) target = $region21
    $region20: #{textcnn_forward.1} parent=1 // pred_region
      _
    $region21: #{textcnn_forward.1} parent=1 // pred_fallthru
      _
    // Predicated region
    $region22: #{textcnn_forward.1} parent=1 // pred_check
      _
    $region23: #{textcnn_forward.1} parent=1 // pred_check_branch
      %56 = sbr.rel (0) target = $region25
    $region24: #{textcnn_forward.1} parent=1 // pred_region
      %58 = dma.done [#allocation3], 1536
    $region25: #{textcnn_forward.1} parent=1 // pred_fallthru
      _
    // Predicated region
    $region26: #{textcnn_forward.1} parent=1 // pred_check
      _
    $region27: #{textcnn_forward.1} parent=1 // pred_check_branch
      %60 = sbr.rel (0) target = $region29
    $region28: #{textcnn_forward.1} parent=1 // pred_region
      %62 = dma.done [#allocation5], 27648
    $region29: #{textcnn_forward.1} parent=1 // pred_fallthru
      _
    // Predicated region
    $region30: #{textcnn_forward.1} parent=1 // pred_check
      _
    $region31: #{textcnn_forward.1} parent=1 // pred_check_branch
      %64 = sbr.rel (0) target = $region33
    $region32: #{textcnn_forward.1} parent=1 // pred_region
      %66 = dma.done [#allocation5], 6144
    $region33: #{textcnn_forward.1} parent=1 // pred_fallthru
      _
    %v68 = vlaneseq
    %v69 = vand.u32 %v68, 127
    %v70 = vld [vmem:[%s0] sm:$0xff]
    %v71 = vld [vmem:[%s0 + $0x8] sm:$0xff]
    %v72 = vld [vmem:[%s0 + $0x10] sm:$0xff]
    %v73 = vld [vmem:[%s0 + $0x18] sm:$0xff]
    %v74 = vld [vmem:[%s0 + $0x20] sm:$0xff]
    %v75 = vld [vmem:[%s0 + $0x28] sm:$0xff]
    %v76 = vld [vmem:[%s0 + $0x30] sm:$0xff]
    %v77 = vld [vmem:[%s0 + $0x38] sm:$0xff]
    %78 = vset.pattern.permute.xlu0 0
    %79 = vperm.xlu0 %78, %v70
    %v80 = vpop.permute.xlu0 %79
    %81 = vset.pattern.permute.xlu0 0
    %82 = vperm.xlu0 %81, %v71
    %v83 = vpop.permute.xlu0 %82
    %84 = vset.pattern.permute.xlu0 0
    %85 = vperm.xlu0 %84, %v72
    %v86 = vpop.permute.xlu0 %85
    %87 = vset.pattern.permute.xlu0 0
    %88 = vperm.xlu0 %87, %v73
    %v89 = vpop.permute.xlu0 %88
    %90 = vset.pattern.permute.xlu0 0
    %91 = vperm.xlu0 %90, %v74
    %v92 = vpop.permute.xlu0 %91
    %93 = vset.pattern.permute.xlu0 0
    %94 = vperm.xlu0 %93, %v75
    %v95 = vpop.permute.xlu0 %94
    %96 = vset.pattern.permute.xlu0 0
    %97 = vperm.xlu0 %96, %v76
    %v98 = vpop.permute.xlu0 %97
    %99 = vset.pattern.permute.xlu0 0
    %100 = vperm.xlu0 %99, %v77
    %v101 = vpop.permute.xlu0 %100
    %vm102 = vcmp.eq.s32.totalorder %v69, %v80
    %vm103 = vcmp.eq.s32.totalorder %v69, %v83
    %vm104 = vcmp.eq.s32.totalorder %v69, %v86
    %vm105 = vcmp.eq.s32.totalorder %v69, %v89
    %vm106 = vcmp.eq.s32.totalorder %v69, %v92
    %vm107 = vcmp.eq.s32.totalorder %v69, %v95
    %vm108 = vcmp.eq.s32.totalorder %v69, %v98
    %vm109 = vcmp.eq.s32.totalorder %v69, %v101
    %v110 = vsel %vm102, 1.0, 0.0
    %v111 = vsel %vm103, 1.0, 0.0
    %v112 = vsel %vm104, 1.0, 0.0
    %v113 = vsel %vm105, 1.0, 0.0
    %v114 = vsel %vm106, 1.0, 0.0
    %v115 = vsel %vm107, 1.0, 0.0
    %v116 = vsel %vm108, 1.0, 0.0
    %v117 = vsel %vm109, 1.0, 0.0
    %v118 = vpack.c.bf16 %v111, %v110
    %v119 = vpack.c.bf16 %v113, %v112
    %v120 = vpack.c.bf16 %v115, %v114
    %v121 = vpack.c.bf16 %v117, %v116
    %v122 = vld [vmem:[#allocation2] sm:$0xff]
    %v123 = vld [vmem:[#allocation2 + $0x8] sm:$0xf]
    %v124 = vld [vmem:[#allocation2 + $0xc] sm:$0xff]
    %v125 = vld [vmem:[#allocation2 + $0x14] sm:$0xf]
    %v126 = vld [vmem:[#allocation2 + $0x18] sm:$0xff]
    %v127 = vld [vmem:[#allocation2 + $0x20] sm:$0xf]
    %v128 = vld [vmem:[#allocation2 + $0x24] sm:$0xff]
    %v129 = vld [vmem:[#allocation2 + $0x2c] sm:$0xf]
    %v130 = vld [vmem:[#allocation2 + $0x30] sm:$0xff]
    %v131 = vld [vmem:[#allocation2 + $0x38] sm:$0xf]
    %v132 = vld [vmem:[#allocation2 + $0x3c] sm:$0xff]
    %v133 = vld [vmem:[#allocation2 + $0x44] sm:$0xf]
    %v134 = vld [vmem:[#allocation2 + $0x48] sm:$0xff]
    %v135 = vld [vmem:[#allocation2 + $0x50] sm:$0xf]
    %v136 = vld [vmem:[#allocation2 + $0x54] sm:$0xff]
    %v137 = vld [vmem:[#allocation2 + $0x5c] sm:$0xf]
    %v154 = vunpack.c.l.b16 %v122
    %v155 = vunpack.c.h.b16 %v122
    %v156 = vunpack.c.l.b16 %v123
    %v157 = vunpack.c.l.b16 %v124
    %v158 = vunpack.c.h.b16 %v124
    %v159 = vunpack.c.l.b16 %v125
    %v160 = vunpack.c.l.b16 %v126
    %v161 = vunpack.c.h.b16 %v126
    %v162 = vunpack.c.l.b16 %v127
    %v163 = vunpack.c.l.b16 %v128
    %v164 = vunpack.c.h.b16 %v128
    %v165 = vunpack.c.l.b16 %v129
    %v166 = vunpack.c.l.b16 %v130
    %v167 = vunpack.c.h.b16 %v130
    %v168 = vunpack.c.l.b16 %v131
    %v169 = vunpack.c.l.b16 %v132
    %v170 = vunpack.c.h.b16 %v132
    %v171 = vunpack.c.l.b16 %v133
    %v172 = vunpack.c.l.b16 %v134
    %v173 = vunpack.c.h.b16 %v134
    %v174 = vunpack.c.l.b16 %v135
    %v175 = vunpack.c.l.b16 %v136
    %v176 = vunpack.c.h.b16 %v136
    %v177 = vunpack.c.l.b16 %v137
    %v178 = vpack.c.b16 %v157, %v154
    %v179 = vpack.c.b16 %v158, %v155
    %v180 = vpack.c.b16 %v159, %v156
    %v181 = vpack.c.b16 %v163, %v160
    %v182 = vpack.c.b16 %v164, %v161
    %v183 = vpack.c.b16 %v165, %v162
    %v184 = vpack.c.b16 %v169, %v166
    %v185 = vpack.c.b16 %v170, %v167
    %v186 = vpack.c.b16 %v171, %v168
    %v187 = vpack.c.b16 %v175, %v172
    %v188 = vpack.c.b16 %v176, %v173
    %v189 = vpack.c.b16 %v177, %v174
    %vm202 = vcmask 523264
    %v204 = vsel %vm202, %v118, 0
    %v207 = vsel %vm202, %v119, 0
    %v210 = vsel %vm202, %v120, 0
    %v213 = vsel %vm202, %v121, 0
    %215 = vmatpush.bf16.msra.mxu0 0
    %216 = vmatpush.bf16.msra.mxu0 0
    %217 = vmatpush.bf16.msra.mxu0 0
    %218 = vmatpush.bf16.msra.mxu0 0
    %219 = vmatpush.bf16.msra.mxu0 %v187
    %220 = vmatpush.bf16.msra.mxu0 %v184
    %221 = vmatpush.bf16.msra.mxu0 %v181
    %222 = vmatpush.bf16.msra.mxu0 %v178
    %223 = vmatmul.bf16.gmra.mxu0 %v204
    %v224 = vpop.f32.mrf.mxu0
    %v225 = vadd.f32 0.0, %v224
    %v226 = vpop.f32.mrf.mxu0
    %v227 = vadd.f32 0.0, %v226
    %228 = vmatmul.bf16.gmra.mxu0 %v207
    %v229 = vpop.f32.mrf.mxu0
    %v230 = vadd.f32 0.0, %v229
    %v231 = vpop.f32.mrf.mxu0
    %v232 = vadd.f32 0.0, %v231
    %233 = vmatmul.bf16.gmra.mxu0 %v210
    %v234 = vpop.f32.mrf.mxu0
    %v235 = vadd.f32 0.0, %v234
    %v236 = vpop.f32.mrf.mxu0
    %v237 = vadd.f32 0.0, %v236
    %238 = vmatmul.bf16.gmra.mxu0 %v213
    %v239 = vpop.f32.mrf.mxu0
    %v240 = vadd.f32 0.0, %v239
    %v241 = vpop.f32.mrf.mxu0
    %v242 = vadd.f32 0.0, %v241
    %243 = vdwg.mxu0
    %244 = vmatpush.bf16.msra.mxu0 0
    %245 = vmatpush.bf16.msra.mxu0 0
    %246 = vmatpush.bf16.msra.mxu0 0
    %247 = vmatpush.bf16.msra.mxu0 0
    %248 = vmatpush.bf16.msra.mxu0 %v188
    %249 = vmatpush.bf16.msra.mxu0 %v185
    %250 = vmatpush.bf16.msra.mxu0 %v182
    %251 = vmatpush.bf16.msra.mxu0 %v179
    %252 = vmatmul.bf16.gmra.mxu0 %v204
    %v253 = vpop.f32.mrf.mxu0
    %v254 = vadd.f32 0.0, %v253
    %v255 = vpop.f32.mrf.mxu0
    %v256 = vadd.f32 0.0, %v255
    %257 = vmatmul.bf16.gmra.mxu0 %v207
    %v258 = vpop.f32.mrf.mxu0
    %v259 = vadd.f32 0.0, %v258
    %v260 = vpop.f32.mrf.mxu0
    %v261 = vadd.f32 0.0, %v260
    %262 = vmatmul.bf16.gmra.mxu0 %v210
    %v263 = vpop.f32.mrf.mxu0
    %v264 = vadd.f32 0.0, %v263
    %v265 = vpop.f32.mrf.mxu0
    %v266 = vadd.f32 0.0, %v265
    %267 = vmatmul.bf16.gmra.mxu0 %v213
    %v268 = vpop.f32.mrf.mxu0
    %v269 = vadd.f32 0.0, %v268
    %v270 = vpop.f32.mrf.mxu0
    %v271 = vadd.f32 0.0, %v270
    %272 = vdwg.mxu0
    %273 = vmatpush.bf16.msra.mxu0 0
    %274 = vmatpush.bf16.msra.mxu0 0
    %275 = vmatpush.bf16.msra.mxu0 0
    %276 = vmatpush.bf16.msra.mxu0 0
    %277 = vmatpush.bf16.msra.mxu0 %v189
    %278 = vmatpush.bf16.msra.mxu0 %v186
    %279 = vmatpush.bf16.msra.mxu0 %v183
    %280 = vmatpush.bf16.msra.mxu0 %v180
    %281 = vmatmul.bf16.gmra.mxu0 %v204
    %v282 = vpop.f32.mrf.mxu0
    %v283 = vadd.f32 0.0, %v282
    %v284 = vpop.f32.mrf.mxu0
    %v285 = vadd.f32 0.0, %v284
    %286 = vmatmul.bf16.gmra.mxu0 %v207
    %v287 = vpop.f32.mrf.mxu0
    %v288 = vadd.f32 0.0, %v287
    %v289 = vpop.f32.mrf.mxu0
    %v290 = vadd.f32 0.0, %v289
    %291 = vmatmul.bf16.gmra.mxu0 %v210
    %v292 = vpop.f32.mrf.mxu0
    %v293 = vadd.f32 0.0, %v292
    %v294 = vpop.f32.mrf.mxu0
    %v295 = vadd.f32 0.0, %v294
    %296 = vmatmul.bf16.gmra.mxu0 %v213
    %v297 = vpop.f32.mrf.mxu0
    %v298 = vadd.f32 0.0, %v297
    %v299 = vpop.f32.mrf.mxu0
    %v300 = vadd.f32 0.0, %v299
    %301 = vdwg.mxu0
    %v302 = vpack.c.bf16 %v227, %v225
    %v303 = vpack.c.bf16 %v256, %v254
    %v304 = vpack.c.bf16 %v285, %v283
    %v305 = vpack.c.bf16 %v232, %v230
    %v306 = vpack.c.bf16 %v261, %v259
    %v307 = vpack.c.bf16 %v290, %v288
    %v308 = vpack.c.bf16 %v237, %v235
    %v309 = vpack.c.bf16 %v266, %v264
    %v310 = vpack.c.bf16 %v295, %v293
    %v311 = vpack.c.bf16 %v242, %v240
    %v312 = vpack.c.bf16 %v271, %v269
    %v313 = vpack.c.bf16 %v300, %v298
    %v314 = vld [vmem:[#allocation4] sm:$0xff]
    %v315 = vld [vmem:[#allocation4 + $0x8] sm:$0xff]
    %v316 = vld [vmem:[#allocation4 + $0x10] sm:$0xff]
    %v317 = vld [vmem:[#allocation4 + $0x18] sm:$0xff]
    %v318 = vld [vmem:[#allocation4 + $0x20] sm:$0xf]
    %v319 = vld [vmem:[#allocation4 + $0x24] sm:$0xff]
    %v320 = vld [vmem:[#allocation4 + $0x2c] sm:$0xff]
    %v321 = vld [vmem:[#allocation4 + $0x34] sm:$0xff]
    %v322 = vld [vmem:[#allocation4 + $0x3c] sm:$0xff]
    %v323 = vld [vmem:[#allocation4 + $0x44] sm:$0xf]
    %v324 = vld [vmem:[#allocation4 + $0x48] sm:$0xff]
    %v325 = vld [vmem:[#allocation4 + $0x50] sm:$0xff]
    %v326 = vld [vmem:[#allocation4 + $0x58] sm:$0xff]
    %v327 = vld [vmem:[#allocation4 + $0x60] sm:$0xff]
    %v328 = vld [vmem:[#allocation4 + $0x68] sm:$0xf]
    %v329 = vld [vmem:[#allocation4 + $0x6c] sm:$0xff]
    %v330 = vld [vmem:[#allocation4 + $0x74] sm:$0xff]
    %v331 = vld [vmem:[#allocation4 + $0x7c] sm:$0xff]
    %v332 = vld [vmem:[#allocation4 + $0x84] sm:$0xff]
    %v333 = vld [vmem:[#allocation4 + $0x8c] sm:$0xf]
    %v334 = vld [vmem:[#allocation4 + $0x90] sm:$0xff]
    %v335 = vld [vmem:[#allocation4 + $0x98] sm:$0xff]
    %v336 = vld [vmem:[#allocation4 + $0xa0] sm:$0xff]
    %v337 = vld [vmem:[#allocation4 + $0xa8] sm:$0xff]
    %v338 = vld [vmem:[#allocation4 + $0xb0] sm:$0xf]
    %v339 = vld [vmem:[#allocation4 + $0xb4] sm:$0xff]
    %v340 = vld [vmem:[#allocation4 + $0xbc] sm:$0xff]
    %v341 = vld [vmem:[#allocation4 + $0xc4] sm:$0xff]
    %v342 = vld [vmem:[#allocation4 + $0xcc] sm:$0xff]
    %v343 = vld [vmem:[#allocation4 + $0xd4] sm:$0xf]
    %v344 = vld [vmem:[#allocation4 + $0xd8] sm:$0xff]
    %v345 = vld [vmem:[#allocation4 + $0xe0] sm:$0xff]
    %v346 = vld [vmem:[#allocation4 + $0xe8] sm:$0xff]
    %v347 = vld [vmem:[#allocation4 + $0xf0] sm:$0xff]
    %v348 = vld [vmem:[#allocation4 + $0xf8] sm:$0xf]
    %v349 = vld [vmem:[#allocation4 + $0xfc] sm:$0xff]
    %v350 = vld [vmem:[#allocation4 + $0x104] sm:$0xff]
    %v351 = vld [vmem:[#allocation4 + $0x10c] sm:$0xff]
    %v352 = vld [vmem:[#allocation4 + $0x114] sm:$0xff]
    %v353 = vld [vmem:[#allocation4 + $0x11c] sm:$0xf]
    %v354 = vld [vmem:[#allocation4 + $0x120] sm:$0xff]
    %v355 = vld [vmem:[#allocation4 + $0x128] sm:$0xff]
    %v356 = vld [vmem:[#allocation4 + $0x130] sm:$0xff]
    %v357 = vld [vmem:[#allocation4 + $0x138] sm:$0xff]
    %v358 = vld [vmem:[#allocation4 + $0x140] sm:$0xf]
    %v359 = vld [vmem:[#allocation4 + $0x144] sm:$0xff]
    %v360 = vld [vmem:[#allocation4 + $0x14c] sm:$0xff]
    %v361 = vld [vmem:[#allocation4 + $0x154] sm:$0xff]
    %v362 = vld [vmem:[#allocation4 + $0x15c] sm:$0xff]
    %v363 = vld [vmem:[#allocation4 + $0x164] sm:$0xf]
    %v364 = vld [vmem:[#allocation4 + $0x168] sm:$0xff]
    %v365 = vld [vmem:[#allocation4 + $0x170] sm:$0xff]
    %v366 = vld [vmem:[#allocation4 + $0x178] sm:$0xff]
    %v367 = vld [vmem:[#allocation4 + $0x180] sm:$0xff]
    %v368 = vld [vmem:[#allocation4 + $0x188] sm:$0xf]
    %v369 = vld [vmem:[#allocation4 + $0x18c] sm:$0xff]
    %v370 = vld [vmem:[#allocation4 + $0x194] sm:$0xff]
    %v371 = vld [vmem:[#allocation4 + $0x19c] sm:$0xff]
    %v372 = vld [vmem:[#allocation4 + $0x1a4] sm:$0xff]
    %v373 = vld [vmem:[#allocation4 + $0x1ac] sm:$0xf]
    %v374 = vld [vmem:[#allocation4 + $0x1b0] sm:$0xff]
    %v375 = vld [vmem:[#allocation4 + $0x1b8] sm:$0xff]
    %v376 = vld [vmem:[#allocation4 + $0x1c0] sm:$0xff]
    %v377 = vld [vmem:[#allocation4 + $0x1c8] sm:$0xff]
    %v378 = vld [vmem:[#allocation4 + $0x1d0] sm:$0xf]
    %v379 = vld [vmem:[#allocation4 + $0x1d4] sm:$0xff]
    %v380 = vld [vmem:[#allocation4 + $0x1dc] sm:$0xff]
    %v381 = vld [vmem:[#allocation4 + $0x1e4] sm:$0xff]
    %v382 = vld [vmem:[#allocation4 + $0x1ec] sm:$0xff]
    %v383 = vld [vmem:[#allocation4 + $0x1f4] sm:$0xf]
    %v384 = vld [vmem:[#allocation4 + $0x1f8] sm:$0xff]
    %v385 = vld [vmem:[#allocation4 + $0x200] sm:$0xff]
    %v386 = vld [vmem:[#allocation4 + $0x208] sm:$0xff]
    %v387 = vld [vmem:[#allocation4 + $0x210] sm:$0xff]
    %v388 = vld [vmem:[#allocation4 + $0x218] sm:$0xf]
    %v389 = vld [vmem:[#allocation4 + $0x21c] sm:$0xff]
    %v390 = vld [vmem:[#allocation4 + $0x224] sm:$0xff]
    %v391 = vld [vmem:[#allocation4 + $0x22c] sm:$0xff]
    %v392 = vld [vmem:[#allocation4 + $0x234] sm:$0xff]
    %v393 = vld [vmem:[#allocation4 + $0x23c] sm:$0xf]
    %v394 = vld [vmem:[#allocation4 + $0x240] sm:$0xff]
    %v395 = vld [vmem:[#allocation4 + $0x248] sm:$0xff]
    %v396 = vld [vmem:[#allocation4 + $0x250] sm:$0xff]
    %v397 = vld [vmem:[#allocation4 + $0x258] sm:$0xff]
    %v398 = vld [vmem:[#allocation4 + $0x260] sm:$0xf]
    %v399 = vld [vmem:[#allocation4 + $0x264] sm:$0xff]
    %v400 = vld [vmem:[#allocation4 + $0x26c] sm:$0xff]
    %v401 = vld [vmem:[#allocation4 + $0x274] sm:$0xff]
    %v402 = vld [vmem:[#allocation4 + $0x27c] sm:$0xff]
    %v403 = vld [vmem:[#allocation4 + $0x284] sm:$0xf]
    %v404 = vld [vmem:[#allocation4 + $0x288] sm:$0xff]
    %v405 = vld [vmem:[#allocation4 + $0x290] sm:$0xff]
    %v406 = vld [vmem:[#allocation4 + $0x298] sm:$0xff]
    %v407 = vld [vmem:[#allocation4 + $0x2a0] sm:$0xff]
    %v408 = vld [vmem:[#allocation4 + $0x2a8] sm:$0xf]
    %v409 = vld [vmem:[#allocation4 + $0x2ac] sm:$0xff]
    %v410 = vld [vmem:[#allocation4 + $0x2b4] sm:$0xff]
    %v411 = vld [vmem:[#allocation4 + $0x2bc] sm:$0xff]
    %v412 = vld [vmem:[#allocation4 + $0x2c4] sm:$0xff]
    %v413 = vld [vmem:[#allocation4 + $0x2cc] sm:$0xf]
    %v414 = vld [vmem:[#allocation4 + $0x2d0] sm:$0xff]
    %v415 = vld [vmem:[#allocation4 + $0x2d8] sm:$0xff]
    %v416 = vld [vmem:[#allocation4 + $0x2e0] sm:$0xff]
    %v417 = vld [vmem:[#allocation4 + $0x2e8] sm:$0xff]
    %v418 = vld [vmem:[#allocation4 + $0x2f0] sm:$0xf]
    %v419 = vld [vmem:[#allocation4 + $0x2f4] sm:$0xff]
    %v420 = vld [vmem:[#allocation4 + $0x2fc] sm:$0xff]
    %v421 = vld [vmem:[#allocation4 + $0x304] sm:$0xff]
    %v422 = vld [vmem:[#allocation4 + $0x30c] sm:$0xff]
    %v423 = vld [vmem:[#allocation4 + $0x314] sm:$0xf]
    %v424 = vld [vmem:[#allocation4 + $0x318] sm:$0xff]
    %v425 = vld [vmem:[#allocation4 + $0x320] sm:$0xff]
    %v426 = vld [vmem:[#allocation4 + $0x328] sm:$0xff]
    %v427 = vld [vmem:[#allocation4 + $0x330] sm:$0xff]
    %v428 = vld [vmem:[#allocation4 + $0x338] sm:$0xf]
    %v429 = vld [vmem:[#allocation4 + $0x33c] sm:$0xff]
    %v430 = vld [vmem:[#allocation4 + $0x344] sm:$0xff]
    %v431 = vld [vmem:[#allocation4 + $0x34c] sm:$0xff]
    %v432 = vld [vmem:[#allocation4 + $0x354] sm:$0xff]
    %v433 = vld [vmem:[#allocation4 + $0x35c] sm:$0xf]
    %v434 = vld [vmem:[#allocation4 + $0x360] sm:$0xff]
    %v435 = vld [vmem:[#allocation4 + $0x368] sm:$0xff]
    %v436 = vld [vmem:[#allocation4 + $0x370] sm:$0xff]
    %v437 = vld [vmem:[#allocation4 + $0x378] sm:$0xff]
    %v438 = vld [vmem:[#allocation4 + $0x380] sm:$0xf]
    %v439 = vld [vmem:[#allocation4 + $0x384] sm:$0xff]
    %v440 = vld [vmem:[#allocation4 + $0x38c] sm:$0xff]
    %v441 = vld [vmem:[#allocation4 + $0x394] sm:$0xff]
    %v442 = vld [vmem:[#allocation4 + $0x39c] sm:$0xff]
    %v443 = vld [vmem:[#allocation4 + $0x3a4] sm:$0xf]
    %v444 = vld [vmem:[#allocation4 + $0x3a8] sm:$0xff]
    %v445 = vld [vmem:[#allocation4 + $0x3b0] sm:$0xff]
    %v446 = vld [vmem:[#allocation4 + $0x3b8] sm:$0xff]
    %v447 = vld [vmem:[#allocation4 + $0x3c0] sm:$0xff]
    %v448 = vld [vmem:[#allocation4 + $0x3c8] sm:$0xf]
    %v449 = vld [vmem:[#allocation4 + $0x3cc] sm:$0xff]
    %v450 = vld [vmem:[#allocation4 + $0x3d4] sm:$0xff]
    %v451 = vld [vmem:[#allocation4 + $0x3dc] sm:$0xff]
    %v452 = vld [vmem:[#allocation4 + $0x3e4] sm:$0xff]
    %v453 = vld [vmem:[#allocation4 + $0x3ec] sm:$0xf]
    %v454 = vld [vmem:[#allocation4 + $0x3f0] sm:$0xff]
    %v455 = vld [vmem:[#allocation4 + $0x3f8] sm:$0xff]
    %v456 = vld [vmem:[#allocation4 + $0x400] sm:$0xff]
    %v457 = vld [vmem:[#allocation4 + $0x408] sm:$0xff]
    %v458 = vld [vmem:[#allocation4 + $0x410] sm:$0xf]
    %v459 = vld [vmem:[#allocation4 + $0x414] sm:$0xff]
    %v460 = vld [vmem:[#allocation4 + $0x41c] sm:$0xff]
    %v461 = vld [vmem:[#allocation4 + $0x424] sm:$0xff]
    %v462 = vld [vmem:[#allocation4 + $0x42c] sm:$0xff]
    %v463 = vld [vmem:[#allocation4 + $0x434] sm:$0xf]
    %v464 = vld [vmem:[#allocation4 + $0x438] sm:$0xff]
    %v465 = vld [vmem:[#allocation4 + $0x440] sm:$0xff]
    %v466 = vld [vmem:[#allocation4 + $0x448] sm:$0xff]
    %v467 = vld [vmem:[#allocation4 + $0x450] sm:$0xff]
    %v468 = vld [vmem:[#allocation4 + $0x458] sm:$0xf]
    %v469 = vld [vmem:[#allocation4 + $0x45c] sm:$0xff]
    %v470 = vld [vmem:[#allocation4 + $0x464] sm:$0xff]
    %v471 = vld [vmem:[#allocation4 + $0x46c] sm:$0xff]
    %v472 = vld [vmem:[#allocation4 + $0x474] sm:$0xff]
    %v473 = vld [vmem:[#allocation4 + $0x47c] sm:$0xf]
    %v474 = vld [vmem:[#allocation4 + $0x480] sm:$0xff]
    %v475 = vld [vmem:[#allocation4 + $0x488] sm:$0xff]
    %v476 = vld [vmem:[#allocation4 + $0x490] sm:$0xff]
    %v477 = vld [vmem:[#allocation4 + $0x498] sm:$0xff]
    %v478 = vld [vmem:[#allocation4 + $0x4a0] sm:$0xf]
    %v479 = vld [vmem:[#allocation4 + $0x4a4] sm:$0xff]
    %v480 = vld [vmem:[#allocation4 + $0x4ac] sm:$0xff]
    %v481 = vld [vmem:[#allocation4 + $0x4b4] sm:$0xff]
    %v482 = vld [vmem:[#allocation4 + $0x4bc] sm:$0xff]
    %v483 = vld [vmem:[#allocation4 + $0x4c4] sm:$0xf]
    %v484 = vld [vmem:[#allocation4 + $0x4c8] sm:$0xff]
    %v485 = vld [vmem:[#allocation4 + $0x4d0] sm:$0xff]
    %v486 = vld [vmem:[#allocation4 + $0x4d8] sm:$0xff]
    %v487 = vld [vmem:[#allocation4 + $0x4e0] sm:$0xff]
    %v488 = vld [vmem:[#allocation4 + $0x4e8] sm:$0xf]
    %v489 = vld [vmem:[#allocation4 + $0x4ec] sm:$0xff]
    %v490 = vld [vmem:[#allocation4 + $0x4f4] sm:$0xff]
    %v491 = vld [vmem:[#allocation4 + $0x4fc] sm:$0xff]
    %v492 = vld [vmem:[#allocation4 + $0x504] sm:$0xff]
    %v493 = vld [vmem:[#allocation4 + $0x50c] sm:$0xf]
    %v494 = vld [vmem:[#allocation4 + $0x510] sm:$0xff]
    %v495 = vld [vmem:[#allocation4 + $0x518] sm:$0xff]
    %v496 = vld [vmem:[#allocation4 + $0x520] sm:$0xff]
    %v497 = vld [vmem:[#allocation4 + $0x528] sm:$0xff]
    %v498 = vld [vmem:[#allocation4 + $0x530] sm:$0xf]
    %v499 = vld [vmem:[#allocation4 + $0x534] sm:$0xff]
    %v500 = vld [vmem:[#allocation4 + $0x53c] sm:$0xff]
    %v501 = vld [vmem:[#allocation4 + $0x544] sm:$0xff]
    %v502 = vld [vmem:[#allocation4 + $0x54c] sm:$0xff]
    %v503 = vld [vmem:[#allocation4 + $0x554] sm:$0xf]
    %v504 = vld [vmem:[#allocation4 + $0x558] sm:$0xff]
    %v505 = vld [vmem:[#allocation4 + $0x560] sm:$0xff]
    %v506 = vld [vmem:[#allocation4 + $0x568] sm:$0xff]
    %v507 = vld [vmem:[#allocation4 + $0x570] sm:$0xff]
    %v508 = vld [vmem:[#allocation4 + $0x578] sm:$0xf]
    %v509 = vld [vmem:[#allocation4 + $0x57c] sm:$0xff]
    %v510 = vld [vmem:[#allocation4 + $0x584] sm:$0xff]
    %v511 = vld [vmem:[#allocation4 + $0x58c] sm:$0xff]
    %v512 = vld [vmem:[#allocation4 + $0x594] sm:$0xff]
    %v513 = vld [vmem:[#allocation4 + $0x59c] sm:$0xf]
    %v514 = vld [vmem:[#allocation4 + $0x5a0] sm:$0xff]
    %v515 = vld [vmem:[#allocation4 + $0x5a8] sm:$0xff]
    %v516 = vld [vmem:[#allocation4 + $0x5b0] sm:$0xff]
    %v517 = vld [vmem:[#allocation4 + $0x5b8] sm:$0xff]
    %v518 = vld [vmem:[#allocation4 + $0x5c0] sm:$0xf]
    %v519 = vld [vmem:[#allocation4 + $0x5c4] sm:$0xff]
    %v520 = vld [vmem:[#allocation4 + $0x5cc] sm:$0xff]
    %v521 = vld [vmem:[#allocation4 + $0x5d4] sm:$0xff]
    %v522 = vld [vmem:[#allocation4 + $0x5dc] sm:$0xff]
    %v523 = vld [vmem:[#allocation4 + $0x5e4] sm:$0xf]
    %v524 = vld [vmem:[#allocation4 + $0x5e8] sm:$0xff]
    %v525 = vld [vmem:[#allocation4 + $0x5f0] sm:$0xff]
    %v526 = vld [vmem:[#allocation4 + $0x5f8] sm:$0xff]
    %v527 = vld [vmem:[#allocation4 + $0x600] sm:$0xff]
    %v528 = vld [vmem:[#allocation4 + $0x608] sm:$0xf]
    %v529 = vld [vmem:[#allocation4 + $0x60c] sm:$0xff]
    %v530 = vld [vmem:[#allocation4 + $0x614] sm:$0xff]
    %v531 = vld [vmem:[#allocation4 + $0x61c] sm:$0xff]
    %v532 = vld [vmem:[#allocation4 + $0x624] sm:$0xff]
    %v533 = vld [vmem:[#allocation4 + $0x62c] sm:$0xf]
    %v534 = vld [vmem:[#allocation4 + $0x630] sm:$0xff]
    %v535 = vld [vmem:[#allocation4 + $0x638] sm:$0xff]
    %v536 = vld [vmem:[#allocation4 + $0x640] sm:$0xff]
    %v537 = vld [vmem:[#allocation4 + $0x648] sm:$0xff]
    %v538 = vld [vmem:[#allocation4 + $0x650] sm:$0xf]
    %v539 = vld [vmem:[#allocation4 + $0x654] sm:$0xff]
    %v540 = vld [vmem:[#allocation4 + $0x65c] sm:$0xff]
    %v541 = vld [vmem:[#allocation4 + $0x664] sm:$0xff]
    %v542 = vld [vmem:[#allocation4 + $0x66c] sm:$0xff]
    %v543 = vld [vmem:[#allocation4 + $0x674] sm:$0xf]
    %v544 = vld [vmem:[#allocation4 + $0x678] sm:$0xff]
    %v545 = vld [vmem:[#allocation4 + $0x680] sm:$0xff]
    %v546 = vld [vmem:[#allocation4 + $0x688] sm:$0xff]
    %v547 = vld [vmem:[#allocation4 + $0x690] sm:$0xff]
    %v548 = vld [vmem:[#allocation4 + $0x698] sm:$0xf]
    %v549 = vld [vmem:[#allocation4 + $0x69c] sm:$0xff]
    %v550 = vld [vmem:[#allocation4 + $0x6a4] sm:$0xff]
    %v551 = vld [vmem:[#allocation4 + $0x6ac] sm:$0xff]
    %v552 = vld [vmem:[#allocation4 + $0x6b4] sm:$0xff]
    %v553 = vld [vmem:[#allocation4 + $0x6bc] sm:$0xf]
    %v794 = vunpack.c.l.b16 %v314
    %v795 = vunpack.c.h.b16 %v314
    %v796 = vunpack.c.l.b16 %v315
    %v797 = vunpack.c.h.b16 %v315
    %v798 = vunpack.c.l.b16 %v316
    %v799 = vunpack.c.h.b16 %v316
    %v800 = vunpack.c.l.b16 %v317
    %v801 = vunpack.c.h.b16 %v317
    %v802 = vunpack.c.l.b16 %v318
    %v803 = vunpack.c.l.b16 %v319
    %v804 = vunpack.c.h.b16 %v319
    %v805 = vunpack.c.l.b16 %v320
    %v806 = vunpack.c.h.b16 %v320
    %v807 = vunpack.c.l.b16 %v321
    %v808 = vunpack.c.h.b16 %v321
    %v809 = vunpack.c.l.b16 %v322
    %v810 = vunpack.c.h.b16 %v322
    %v811 = vunpack.c.l.b16 %v323
    %v812 = vunpack.c.l.b16 %v324
    %v813 = vunpack.c.h.b16 %v324
    %v814 = vunpack.c.l.b16 %v325
    %v815 = vunpack.c.h.b16 %v325
    %v816 = vunpack.c.l.b16 %v326
    %v817 = vunpack.c.h.b16 %v326
    %v818 = vunpack.c.l.b16 %v327
    %v819 = vunpack.c.h.b16 %v327
    %v820 = vunpack.c.l.b16 %v328
    %v821 = vunpack.c.l.b16 %v329
    %v822 = vunpack.c.h.b16 %v329
    %v823 = vunpack.c.l.b16 %v330
    %v824 = vunpack.c.h.b16 %v330
    %v825 = vunpack.c.l.b16 %v331
    %v826 = vunpack.c.h.b16 %v331
    %v827 = vunpack.c.l.b16 %v332
    %v828 = vunpack.c.h.b16 %v332
    %v829 = vunpack.c.l.b16 %v333
    %v830 = vunpack.c.l.b16 %v334
    %v831 = vunpack.c.h.b16 %v334
    %v832 = vunpack.c.l.b16 %v335
    %v833 = vunpack.c.h.b16 %v335
    %v834 = vunpack.c.l.b16 %v336
    %v835 = vunpack.c.h.b16 %v336
    %v836 = vunpack.c.l.b16 %v337
    %v837 = vunpack.c.h.b16 %v337
    %v838 = vunpack.c.l.b16 %v338
    %v839 = vunpack.c.l.b16 %v339
    %v840 = vunpack.c.h.b16 %v339
    %v841 = vunpack.c.l.b16 %v340
    %v842 = vunpack.c.h.b16 %v340
    %v843 = vunpack.c.l.b16 %v341
    %v844 = vunpack.c.h.b16 %v341
    %v845 = vunpack.c.l.b16 %v342
    %v846 = vunpack.c.h.b16 %v342
    %v847 = vunpack.c.l.b16 %v343
    %v848 = vunpack.c.l.b16 %v344
    %v849 = vunpack.c.h.b16 %v344
    %v850 = vunpack.c.l.b16 %v345
    %v851 = vunpack.c.h.b16 %v345
    %v852 = vunpack.c.l.b16 %v346
    %v853 = vunpack.c.h.b16 %v346
    %v854 = vunpack.c.l.b16 %v347
    %v855 = vunpack.c.h.b16 %v347
    %v856 = vunpack.c.l.b16 %v348
    %v857 = vunpack.c.l.b16 %v349
    %v858 = vunpack.c.h.b16 %v349
    %v859 = vunpack.c.l.b16 %v350
    %v860 = vunpack.c.h.b16 %v350
    %v861 = vunpack.c.l.b16 %v351
    %v862 = vunpack.c.h.b16 %v351
    %v863 = vunpack.c.l.b16 %v352
    %v864 = vunpack.c.h.b16 %v352
    %v865 = vunpack.c.l.b16 %v353
    %v866 = vunpack.c.l.b16 %v354
    %v867 = vunpack.c.h.b16 %v354
    %v868 = vunpack.c.l.b16 %v355
    %v869 = vunpack.c.h.b16 %v355
    %v870 = vunpack.c.l.b16 %v356
    %v871 = vunpack.c.h.b16 %v356
    %v872 = vunpack.c.l.b16 %v357
    %v873 = vunpack.c.h.b16 %v357
    %v874 = vunpack.c.l.b16 %v358
    %v875 = vunpack.c.l.b16 %v359
    %v876 = vunpack.c.h.b16 %v359
    %v877 = vunpack.c.l.b16 %v360
    %v878 = vunpack.c.h.b16 %v360
    %v879 = vunpack.c.l.b16 %v361
    %v880 = vunpack.c.h.b16 %v361
    %v881 = vunpack.c.l.b16 %v362
    %v882 = vunpack.c.h.b16 %v362
    %v883 = vunpack.c.l.b16 %v363
    %v884 = vunpack.c.l.b16 %v364
    %v885 = vunpack.c.h.b16 %v364
    %v886 = vunpack.c.l.b16 %v365
    %v887 = vunpack.c.h.b16 %v365
    %v888 = vunpack.c.l.b16 %v366
    %v889 = vunpack.c.h.b16 %v366
    %v890 = vunpack.c.l.b16 %v367
    %v891 = vunpack.c.h.b16 %v367
    %v892 = vunpack.c.l.b16 %v368
    %v893 = vunpack.c.l.b16 %v369
    %v894 = vunpack.c.h.b16 %v369
    %v895 = vunpack.c.l.b16 %v370
    %v896 = vunpack.c.h.b16 %v370
    %v897 = vunpack.c.l.b16 %v371
    %v898 = vunpack.c.h.b16 %v371
    %v899 = vunpack.c.l.b16 %v372
    %v900 = vunpack.c.h.b16 %v372
    %v901 = vunpack.c.l.b16 %v373
    %v902 = vunpack.c.l.b16 %v374
    %v903 = vunpack.c.h.b16 %v374
    %v904 = vunpack.c.l.b16 %v375
    %v905 = vunpack.c.h.b16 %v375
    %v906 = vunpack.c.l.b16 %v376
    %v907 = vunpack.c.h.b16 %v376
    %v908 = vunpack.c.l.b16 %v377
    %v909 = vunpack.c.h.b16 %v377
    %v910 = vunpack.c.l.b16 %v378
    %v911 = vunpack.c.l.b16 %v379
    %v912 = vunpack.c.h.b16 %v379
    %v913 = vunpack.c.l.b16 %v380
    %v914 = vunpack.c.h.b16 %v380
    %v915 = vunpack.c.l.b16 %v381
    %v916 = vunpack.c.h.b16 %v381
    %v917 = vunpack.c.l.b16 %v382
    %v918 = vunpack.c.h.b16 %v382
    %v919 = vunpack.c.l.b16 %v383
    %v920 = vunpack.c.l.b16 %v384
    %v921 = vunpack.c.h.b16 %v384
    %v922 = vunpack.c.l.b16 %v385
    %v923 = vunpack.c.h.b16 %v385
    %v924 = vunpack.c.l.b16 %v386
    %v925 = vunpack.c.h.b16 %v386
    %v926 = vunpack.c.l.b16 %v387
    %v927 = vunpack.c.h.b16 %v387
    %v928 = vunpack.c.l.b16 %v388
    %v929 = vunpack.c.l.b16 %v389
    %v930 = vunpack.c.h.b16 %v389
    %v931 = vunpack.c.l.b16 %v390
    %v932 = vunpack.c.h.b16 %v390
    %v933 = vunpack.c.l.b16 %v391
    %v934 = vunpack.c.h.b16 %v391
    %v935 = vunpack.c.l.b16 %v392
    %v936 = vunpack.c.h.b16 %v392
    %v937 = vunpack.c.l.b16 %v393
    %v938 = vunpack.c.l.b16 %v394
    %v939 = vunpack.c.h.b16 %v394
    %v940 = vunpack.c.l.b16 %v395
    %v941 = vunpack.c.h.b16 %v395
    %v942 = vunpack.c.l.b16 %v396
    %v943 = vunpack.c.h.b16 %v396
    %v944 = vunpack.c.l.b16 %v397
    %v945 = vunpack.c.h.b16 %v397
    %v946 = vunpack.c.l.b16 %v398
    %v947 = vunpack.c.l.b16 %v399
    %v948 = vunpack.c.h.b16 %v399
    %v949 = vunpack.c.l.b16 %v400
    %v950 = vunpack.c.h.b16 %v400
    %v951 = vunpack.c.l.b16 %v401
    %v952 = vunpack.c.h.b16 %v401
    %v953 = vunpack.c.l.b16 %v402
    %v954 = vunpack.c.h.b16 %v402
    %v955 = vunpack.c.l.b16 %v403
    %v956 = vunpack.c.l.b16 %v404
    %v957 = vunpack.c.h.b16 %v404
    %v958 = vunpack.c.l.b16 %v405
    %v959 = vunpack.c.h.b16 %v405
    %v960 = vunpack.c.l.b16 %v406
    %v961 = vunpack.c.h.b16 %v406
    %v962 = vunpack.c.l.b16 %v407
    %v963 = vunpack.c.h.b16 %v407
    %v964 = vunpack.c.l.b16 %v408
    %v965 = vunpack.c.l.b16 %v409
    %v966 = vunpack.c.h.b16 %v409
    %v967 = vunpack.c.l.b16 %v410
    %v968 = vunpack.c.h.b16 %v410
    %v969 = vunpack.c.l.b16 %v411
    %v970 = vunpack.c.h.b16 %v411
    %v971 = vunpack.c.l.b16 %v412
    %v972 = vunpack.c.h.b16 %v412
    %v973 = vunpack.c.l.b16 %v413
    %v974 = vunpack.c.l.b16 %v414
    %v975 = vunpack.c.h.b16 %v414
    %v976 = vunpack.c.l.b16 %v415
    %v977 = vunpack.c.h.b16 %v415
    %v978 = vunpack.c.l.b16 %v416
    %v979 = vunpack.c.h.b16 %v416
    %v980 = vunpack.c.l.b16 %v417
    %v981 = vunpack.c.h.b16 %v417
    %v982 = vunpack.c.l.b16 %v418
    %v983 = vunpack.c.l.b16 %v419
    %v984 = vunpack.c.h.b16 %v419
    %v985 = vunpack.c.l.b16 %v420
    %v986 = vunpack.c.h.b16 %v420
    %v987 = vunpack.c.l.b16 %v421
    %v988 = vunpack.c.h.b16 %v421
    %v989 = vunpack.c.l.b16 %v422
    %v990 = vunpack.c.h.b16 %v422
    %v991 = vunpack.c.l.b16 %v423
    %v992 = vunpack.c.l.b16 %v424
    %v993 = vunpack.c.h.b16 %v424
    %v994 = vunpack.c.l.b16 %v425
    %v995 = vunpack.c.h.b16 %v425
    %v996 = vunpack.c.l.b16 %v426
    %v997 = vunpack.c.h.b16 %v426
    %v998 = vunpack.c.l.b16 %v427
    %v999 = vunpack.c.h.b16 %v427
    %v1000 = vunpack.c.l.b16 %v428
    %v1001 = vunpack.c.l.b16 %v429
    %v1002 = vunpack.c.h.b16 %v429
    %v1003 = vunpack.c.l.b16 %v430
    %v1004 = vunpack.c.h.b16 %v430
    %v1005 = vunpack.c.l.b16 %v431
    %v1006 = vunpack.c.h.b16 %v431
    %v1007 = vunpack.c.l.b16 %v432
    %v1008 = vunpack.c.h.b16 %v432
    %v1009 = vunpack.c.l.b16 %v433
    %v1010 = vunpack.c.l.b16 %v434
    %v1011 = vunpack.c.h.b16 %v434
    %v1012 = vunpack.c.l.b16 %v435
    %v1013 = vunpack.c.h.b16 %v435
    %v1014 = vunpack.c.l.b16 %v436
    %v1015 = vunpack.c.h.b16 %v436
    %v1016 = vunpack.c.l.b16 %v437
    %v1017 = vunpack.c.h.b16 %v437
    %v1018 = vunpack.c.l.b16 %v438
    %v1019 = vunpack.c.l.b16 %v439
    %v1020 = vunpack.c.h.b16 %v439
    %v1021 = vunpack.c.l.b16 %v440
    %v1022 = vunpack.c.h.b16 %v440
    %v1023 = vunpack.c.l.b16 %v441
    %v1024 = vunpack.c.h.b16 %v441
    %v1025 = vunpack.c.l.b16 %v442
    %v1026 = vunpack.c.h.b16 %v442
    %v1027 = vunpack.c.l.b16 %v443
    %v1028 = vunpack.c.l.b16 %v444
    %v1029 = vunpack.c.h.b16 %v444
    %v1030 = vunpack.c.l.b16 %v445
    %v1031 = vunpack.c.h.b16 %v445
    %v1032 = vunpack.c.l.b16 %v446
    %v1033 = vunpack.c.h.b16 %v446
    %v1034 = vunpack.c.l.b16 %v447
    %v1035 = vunpack.c.h.b16 %v447
    %v1036 = vunpack.c.l.b16 %v448
    %v1037 = vunpack.c.l.b16 %v449
    %v1038 = vunpack.c.h.b16 %v449
    %v1039 = vunpack.c.l.b16 %v450
    %v1040 = vunpack.c.h.b16 %v450
    %v1041 = vunpack.c.l.b16 %v451
    %v1042 = vunpack.c.h.b16 %v451
    %v1043 = vunpack.c.l.b16 %v452
    %v1044 = vunpack.c.h.b16 %v452
    %v1045 = vunpack.c.l.b16 %v453
    %v1046 = vunpack.c.l.b16 %v454
    %v1047 = vunpack.c.h.b16 %v454
    %v1048 = vunpack.c.l.b16 %v455
    %v1049 = vunpack.c.h.b16 %v455
    %v1050 = vunpack.c.l.b16 %v456
    %v1051 = vunpack.c.h.b16 %v456
    %v1052 = vunpack.c.l.b16 %v457
    %v1053 = vunpack.c.h.b16 %v457
    %v1054 = vunpack.c.l.b16 %v458
    %v1055 = vunpack.c.l.b16 %v459
    %v1056 = vunpack.c.h.b16 %v459
    %v1057 = vunpack.c.l.b16 %v460
    %v1058 = vunpack.c.h.b16 %v460
    %v1059 = vunpack.c.l.b16 %v461
    %v1060 = vunpack.c.h.b16 %v461
    %v1061 = vunpack.c.l.b16 %v462
    %v1062 = vunpack.c.h.b16 %v462
    %v1063 = vunpack.c.l.b16 %v463
    %v1064 = vunpack.c.l.b16 %v464
    %v1065 = vunpack.c.h.b16 %v464
    %v1066 = vunpack.c.l.b16 %v465
    %v1067 = vunpack.c.h.b16 %v465
    %v1068 = vunpack.c.l.b16 %v466
    %v1069 = vunpack.c.h.b16 %v466
    %v1070 = vunpack.c.l.b16 %v467
    %v1071 = vunpack.c.h.b16 %v467
    %v1072 = vunpack.c.l.b16 %v468
    %v1073 = vunpack.c.l.b16 %v469
    %v1074 = vunpack.c.h.b16 %v469
    %v1075 = vunpack.c.l.b16 %v470
    %v1076 = vunpack.c.h.b16 %v470
    %v1077 = vunpack.c.l.b16 %v471
    %v1078 = vunpack.c.h.b16 %v471
    %v1079 = vunpack.c.l.b16 %v472
    %v1080 = vunpack.c.h.b16 %v472
    %v1081 = vunpack.c.l.b16 %v473
    %v1082 = vunpack.c.l.b16 %v474
    %v1083 = vunpack.c.h.b16 %v474
    %v1084 = vunpack.c.l.b16 %v475
    %v1085 = vunpack.c.h.b16 %v475
    %v1086 = vunpack.c.l.b16 %v476
    %v1087 = vunpack.c.h.b16 %v476
    %v1088 = vunpack.c.l.b16 %v477
    %v1089 = vunpack.c.h.b16 %v477
    %v1090 = vunpack.c.l.b16 %v478
    %v1091 = vunpack.c.l.b16 %v479
    %v1092 = vunpack.c.h.b16 %v479
    %v1093 = vunpack.c.l.b16 %v480
    %v1094 = vunpack.c.h.b16 %v480
    %v1095 = vunpack.c.l.b16 %v481
    %v1096 = vunpack.c.h.b16 %v481
    %v1097 = vunpack.c.l.b16 %v482
    %v1098 = vunpack.c.h.b16 %v482
    %v1099 = vunpack.c.l.b16 %v483
    %v1100 = vunpack.c.l.b16 %v484
    %v1101 = vunpack.c.h.b16 %v484
    %v1102 = vunpack.c.l.b16 %v485
    %v1103 = vunpack.c.h.b16 %v485
    %v1104 = vunpack.c.l.b16 %v486
    %v1105 = vunpack.c.h.b16 %v486
    %v1106 = vunpack.c.l.b16 %v487
    %v1107 = vunpack.c.h.b16 %v487
    %v1108 = vunpack.c.l.b16 %v488
    %v1109 = vunpack.c.l.b16 %v489
    %v1110 = vunpack.c.h.b16 %v489
    %v1111 = vunpack.c.l.b16 %v490
    %v1112 = vunpack.c.h.b16 %v490
    %v1113 = vunpack.c.l.b16 %v491
    %v1114 = vunpack.c.h.b16 %v491
    %v1115 = vunpack.c.l.b16 %v492
    %v1116 = vunpack.c.h.b16 %v492
    %v1117 = vunpack.c.l.b16 %v493
    %v1118 = vunpack.c.l.b16 %v494
    %v1119 = vunpack.c.h.b16 %v494
    %v1120 = vunpack.c.l.b16 %v495
    %v1121 = vunpack.c.h.b16 %v495
    %v1122 = vunpack.c.l.b16 %v496
    %v1123 = vunpack.c.h.b16 %v496
    %v1124 = vunpack.c.l.b16 %v497
    %v1125 = vunpack.c.h.b16 %v497
    %v1126 = vunpack.c.l.b16 %v498
    %v1127 = vunpack.c.l.b16 %v499
    %v1128 = vunpack.c.h.b16 %v499
    %v1129 = vunpack.c.l.b16 %v500
    %v1130 = vunpack.c.h.b16 %v500
    %v1131 = vunpack.c.l.b16 %v501
    %v1132 = vunpack.c.h.b16 %v501
    %v1133 = vunpack.c.l.b16 %v502
    %v1134 = vunpack.c.h.b16 %v502
    %v1135 = vunpack.c.l.b16 %v503
    %v1136 = vunpack.c.l.b16 %v504
    %v1137 = vunpack.c.h.b16 %v504
    %v1138 = vunpack.c.l.b16 %v505
    %v1139 = vunpack.c.h.b16 %v505
    %v1140 = vunpack.c.l.b16 %v506
    %v1141 = vunpack.c.h.b16 %v506
    %v1142 = vunpack.c.l.b16 %v507
    %v1143 = vunpack.c.h.b16 %v507
    %v1144 = vunpack.c.l.b16 %v508
    %v1145 = vunpack.c.l.b16 %v509
    %v1146 = vunpack.c.h.b16 %v509
    %v1147 = vunpack.c.l.b16 %v510
    %v1148 = vunpack.c.h.b16 %v510
    %v1149 = vunpack.c.l.b16 %v511
    %v1150 = vunpack.c.h.b16 %v511
    %v1151 = vunpack.c.l.b16 %v512
    %v1152 = vunpack.c.h.b16 %v512
    %v1153 = vunpack.c.l.b16 %v513
    %v1154 = vunpack.c.l.b16 %v514
    %v1155 = vunpack.c.h.b16 %v514
    %v1156 = vunpack.c.l.b16 %v515
    %v1157 = vunpack.c.h.b16 %v515
    %v1158 = vunpack.c.l.b16 %v516
    %v1159 = vunpack.c.h.b16 %v516
    %v1160 = vunpack.c.l.b16 %v517
    %v1161 = vunpack.c.h.b16 %v517
    %v1162 = vunpack.c.l.b16 %v518
    %v1163 = vunpack.c.l.b16 %v519
    %v1164 = vunpack.c.h.b16 %v519
    %v1165 = vunpack.c.l.b16 %v520
    %v1166 = vunpack.c.h.b16 %v520
    %v1167 = vunpack.c.l.b16 %v521
    %v1168 = vunpack.c.h.b16 %v521
    %v1169 = vunpack.c.l.b16 %v522
    %v1170 = vunpack.c.h.b16 %v522
    %v1171 = vunpack.c.l.b16 %v523
    %v1172 = vunpack.c.l.b16 %v524
    %v1173 = vunpack.c.h.b16 %v524
    %v1174 = vunpack.c.l.b16 %v525
    %v1175 = vunpack.c.h.b16 %v525
    %v1176 = vunpack.c.l.b16 %v526
    %v1177 = vunpack.c.h.b16 %v526
    %v1178 = vunpack.c.l.b16 %v527
    %v1179 = vunpack.c.h.b16 %v527
    %v1180 = vunpack.c.l.b16 %v528
    %v1181 = vunpack.c.l.b16 %v529
    %v1182 = vunpack.c.h.b16 %v529
    %v1183 = vunpack.c.l.b16 %v530
    %v1184 = vunpack.c.h.b16 %v530
    %v1185 = vunpack.c.l.b16 %v531
    %v1186 = vunpack.c.h.b16 %v531
    %v1187 = vunpack.c.l.b16 %v532
    %v1188 = vunpack.c.h.b16 %v532
    %v1189 = vunpack.c.l.b16 %v533
    %v1190 = vunpack.c.l.b16 %v534
    %v1191 = vunpack.c.h.b16 %v534
    %v1192 = vunpack.c.l.b16 %v535
    %v1193 = vunpack.c.h.b16 %v535
    %v1194 = vunpack.c.l.b16 %v536
    %v1195 = vunpack.c.h.b16 %v536
    %v1196 = vunpack.c.l.b16 %v537
    %v1197 = vunpack.c.h.b16 %v537
    %v1198 = vunpack.c.l.b16 %v538
    %v1199 = vunpack.c.l.b16 %v539
    %v1200 = vunpack.c.h.b16 %v539
    %v1201 = vunpack.c.l.b16 %v540
    %v1202 = vunpack.c.h.b16 %v540
    %v1203 = vunpack.c.l.b16 %v541
    %v1204 = vunpack.c.h.b16 %v541
    %v1205 = vunpack.c.l.b16 %v542
    %v1206 = vunpack.c.h.b16 %v542
    %v1207 = vunpack.c.l.b16 %v543
    %v1208 = vunpack.c.l.b16 %v544
    %v1209 = vunpack.c.h.b16 %v544
    %v1210 = vunpack.c.l.b16 %v545
    %v1211 = vunpack.c.h.b16 %v545
    %v1212 = vunpack.c.l.b16 %v546
    %v1213 = vunpack.c.h.b16 %v546
    %v1214 = vunpack.c.l.b16 %v547
    %v1215 = vunpack.c.h.b16 %v547
    %v1216 = vunpack.c.l.b16 %v548
    %v1217 = vunpack.c.l.b16 %v549
    %v1218 = vunpack.c.h.b16 %v549
    %v1219 = vunpack.c.l.b16 %v550
    %v1220 = vunpack.c.h.b16 %v550
    %v1221 = vunpack.c.l.b16 %v551
    %v1222 = vunpack.c.h.b16 %v551
    %v1223 = vunpack.c.l.b16 %v552
    %v1224 = vunpack.c.h.b16 %v552
    %v1225 = vunpack.c.l.b16 %v553
    %v1226 = vpack.c.b16 %v803, %v794
    %v1227 = vpack.c.b16 %v804, %v795
    %v1228 = vpack.c.b16 %v805, %v796
    %v1229 = vpack.c.b16 %v806, %v797
    %v1230 = vpack.c.b16 %v807, %v798
    %v1231 = vpack.c.b16 %v808, %v799
    %v1232 = vpack.c.b16 %v809, %v800
    %v1233 = vpack.c.b16 %v810, %v801
    %v1234 = vpack.c.b16 %v811, %v802
    %v1235 = vpack.c.b16 %v821, %v812
    %v1236 = vpack.c.b16 %v822, %v813
    %v1237 = vpack.c.b16 %v823, %v814
    %v1238 = vpack.c.b16 %v824, %v815
    %v1239 = vpack.c.b16 %v825, %v816
    %v1240 = vpack.c.b16 %v826, %v817
    %v1241 = vpack.c.b16 %v827, %v818
    %v1242 = vpack.c.b16 %v828, %v819
    %v1243 = vpack.c.b16 %v829, %v820
    %v1244 = vpack.c.b16 %v839, %v830
    %v1245 = vpack.c.b16 %v840, %v831
    %v1246 = vpack.c.b16 %v841, %v832
    %v1247 = vpack.c.b16 %v842, %v833
    %v1248 = vpack.c.b16 %v843, %v834
    %v1249 = vpack.c.b16 %v844, %v835
    %v1250 = vpack.c.b16 %v845, %v836
    %v1251 = vpack.c.b16 %v846, %v837
    %v1252 = vpack.c.b16 %v847, %v838
    %v1253 = vpack.c.b16 %v857, %v848
    %v1254 = vpack.c.b16 %v858, %v849
    %v1255 = vpack.c.b16 %v859, %v850
    %v1256 = vpack.c.b16 %v860, %v851
    %v1257 = vpack.c.b16 %v861, %v852
    %v1258 = vpack.c.b16 %v862, %v853
    %v1259 = vpack.c.b16 %v863, %v854
    %v1260 = vpack.c.b16 %v864, %v855
    %v1261 = vpack.c.b16 %v865, %v856
    %v1262 = vpack.c.b16 %v875, %v866
    %v1263 = vpack.c.b16 %v876, %v867
    %v1264 = vpack.c.b16 %v877, %v868
    %v1265 = vpack.c.b16 %v878, %v869
    %v1266 = vpack.c.b16 %v879, %v870
    %v1267 = vpack.c.b16 %v880, %v871
    %v1268 = vpack.c.b16 %v881, %v872
    %v1269 = vpack.c.b16 %v882, %v873
    %v1270 = vpack.c.b16 %v883, %v874
    %v1271 = vpack.c.b16 %v893, %v884
    %v1272 = vpack.c.b16 %v894, %v885
    %v1273 = vpack.c.b16 %v895, %v886
    %v1274 = vpack.c.b16 %v896, %v887
    %v1275 = vpack.c.b16 %v897, %v888
    %v1276 = vpack.c.b16 %v898, %v889
    %v1277 = vpack.c.b16 %v899, %v890
    %v1278 = vpack.c.b16 %v900, %v891
    %v1279 = vpack.c.b16 %v901, %v892
    %v1280 = vpack.c.b16 %v911, %v902
    %v1281 = vpack.c.b16 %v912, %v903
    %v1282 = vpack.c.b16 %v913, %v904
    %v1283 = vpack.c.b16 %v914, %v905
    %v1284 = vpack.c.b16 %v915, %v906
    %v1285 = vpack.c.b16 %v916, %v907
    %v1286 = vpack.c.b16 %v917, %v908
    %v1287 = vpack.c.b16 %v918, %v909
    %v1288 = vpack.c.b16 %v919, %v910
    %v1289 = vpack.c.b16 %v929, %v920
    %v1290 = vpack.c.b16 %v930, %v921
    %v1291 = vpack.c.b16 %v931, %v922
    %v1292 = vpack.c.b16 %v932, %v923
    %v1293 = vpack.c.b16 %v933, %v924
    %v1294 = vpack.c.b16 %v934, %v925
    %v1295 = vpack.c.b16 %v935, %v926
    %v1296 = vpack.c.b16 %v936, %v927
    %v1297 = vpack.c.b16 %v937, %v928
    %v1298 = vpack.c.b16 %v947, %v938
    %v1299 = vpack.c.b16 %v948, %v939
    %v1300 = vpack.c.b16 %v949, %v940
    %v1301 = vpack.c.b16 %v950, %v941
    %v1302 = vpack.c.b16 %v951, %v942
    %v1303 = vpack.c.b16 %v952, %v943
    %v1304 = vpack.c.b16 %v953, %v944
    %v1305 = vpack.c.b16 %v954, %v945
    %v1306 = vpack.c.b16 %v955, %v946
    %v1307 = vpack.c.b16 %v965, %v956
    %v1308 = vpack.c.b16 %v966, %v957
    %v1309 = vpack.c.b16 %v967, %v958
    %v1310 = vpack.c.b16 %v968, %v959
    %v1311 = vpack.c.b16 %v969, %v960
    %v1312 = vpack.c.b16 %v970, %v961
    %v1313 = vpack.c.b16 %v971, %v962
    %v1314 = vpack.c.b16 %v972, %v963
    %v1315 = vpack.c.b16 %v973, %v964
    %v1316 = vpack.c.b16 %v983, %v974
    %v1317 = vpack.c.b16 %v984, %v975
    %v1318 = vpack.c.b16 %v985, %v976
    %v1319 = vpack.c.b16 %v986, %v977
    %v1320 = vpack.c.b16 %v987, %v978
    %v1321 = vpack.c.b16 %v988, %v979
    %v1322 = vpack.c.b16 %v989, %v980
    %v1323 = vpack.c.b16 %v990, %v981
    %v1324 = vpack.c.b16 %v991, %v982
    %v1325 = vpack.c.b16 %v1001, %v992
    %v1326 = vpack.c.b16 %v1002, %v993
    %v1327 = vpack.c.b16 %v1003, %v994
    %v1328 = vpack.c.b16 %v1004, %v995
    %v1329 = vpack.c.b16 %v1005, %v996
    %v1330 = vpack.c.b16 %v1006, %v997
    %v1331 = vpack.c.b16 %v1007, %v998
    %v1332 = vpack.c.b16 %v1008, %v999
    %v1333 = vpack.c.b16 %v1009, %v1000
    %v1334 = vpack.c.b16 %v1019, %v1010
    %v1335 = vpack.c.b16 %v1020, %v1011
    %v1336 = vpack.c.b16 %v1021, %v1012
    %v1337 = vpack.c.b16 %v1022, %v1013
    %v1338 = vpack.c.b16 %v1023, %v1014
    %v1339 = vpack.c.b16 %v1024, %v1015
    %v1340 = vpack.c.b16 %v1025, %v1016
    %v1341 = vpack.c.b16 %v1026, %v1017
    %v1342 = vpack.c.b16 %v1027, %v1018
    %v1343 = vpack.c.b16 %v1037, %v1028
    %v1344 = vpack.c.b16 %v1038, %v1029
    %v1345 = vpack.c.b16 %v1039, %v1030
    %v1346 = vpack.c.b16 %v1040, %v1031
    %v1347 = vpack.c.b16 %v1041, %v1032
    %v1348 = vpack.c.b16 %v1042, %v1033
    %v1349 = vpack.c.b16 %v1043, %v1034
    %v1350 = vpack.c.b16 %v1044, %v1035
    %v1351 = vpack.c.b16 %v1045, %v1036
    %v1352 = vpack.c.b16 %v1055, %v1046
    %v1353 = vpack.c.b16 %v1056, %v1047
    %v1354 = vpack.c.b16 %v1057, %v1048
    %v1355 = vpack.c.b16 %v1058, %v1049
    %v1356 = vpack.c.b16 %v1059, %v1050
    %v1357 = vpack.c.b16 %v1060, %v1051
    %v1358 = vpack.c.b16 %v1061, %v1052
    %v1359 = vpack.c.b16 %v1062, %v1053
    %v1360 = vpack.c.b16 %v1063, %v1054
    %v1361 = vpack.c.b16 %v1073, %v1064
    %v1362 = vpack.c.b16 %v1074, %v1065
    %v1363 = vpack.c.b16 %v1075, %v1066
    %v1364 = vpack.c.b16 %v1076, %v1067
    %v1365 = vpack.c.b16 %v1077, %v1068
    %v1366 = vpack.c.b16 %v1078, %v1069
    %v1367 = vpack.c.b16 %v1079, %v1070
    %v1368 = vpack.c.b16 %v1080, %v1071
    %v1369 = vpack.c.b16 %v1081, %v1072
    %v1370 = vpack.c.b16 %v1091, %v1082
    %v1371 = vpack.c.b16 %v1092, %v1083
    %v1372 = vpack.c.b16 %v1093, %v1084
    %v1373 = vpack.c.b16 %v1094, %v1085
    %v1374 = vpack.c.b16 %v1095, %v1086
    %v1375 = vpack.c.b16 %v1096, %v1087
    %v1376 = vpack.c.b16 %v1097, %v1088
    %v1377 = vpack.c.b16 %v1098, %v1089
    %v1378 = vpack.c.b16 %v1099, %v1090
    %v1379 = vpack.c.b16 %v1109, %v1100
    %v1380 = vpack.c.b16 %v1110, %v1101
    %v1381 = vpack.c.b16 %v1111, %v1102
    %v1382 = vpack.c.b16 %v1112, %v1103
    %v1383 = vpack.c.b16 %v1113, %v1104
    %v1384 = vpack.c.b16 %v1114, %v1105
    %v1385 = vpack.c.b16 %v1115, %v1106
    %v1386 = vpack.c.b16 %v1116, %v1107
    %v1387 = vpack.c.b16 %v1117, %v1108
    %v1388 = vpack.c.b16 %v1127, %v1118
    %v1389 = vpack.c.b16 %v1128, %v1119
    %v1390 = vpack.c.b16 %v1129, %v1120
    %v1391 = vpack.c.b16 %v1130, %v1121
    %v1392 = vpack.c.b16 %v1131, %v1122
    %v1393 = vpack.c.b16 %v1132, %v1123
    %v1394 = vpack.c.b16 %v1133, %v1124
    %v1395 = vpack.c.b16 %v1134, %v1125
    %v1396 = vpack.c.b16 %v1135, %v1126
    %v1397 = vpack.c.b16 %v1145, %v1136
    %v1398 = vpack.c.b16 %v1146, %v1137
    %v1399 = vpack.c.b16 %v1147, %v1138
    %v1400 = vpack.c.b16 %v1148, %v1139
    %v1401 = vpack.c.b16 %v1149, %v1140
    %v1402 = vpack.c.b16 %v1150, %v1141
    %v1403 = vpack.c.b16 %v1151, %v1142
    %v1404 = vpack.c.b16 %v1152, %v1143
    %v1405 = vpack.c.b16 %v1153, %v1144
    %v1406 = vpack.c.b16 %v1163, %v1154
    %v1407 = vpack.c.b16 %v1164, %v1155
    %v1408 = vpack.c.b16 %v1165, %v1156
    %v1409 = vpack.c.b16 %v1166, %v1157
    %v1410 = vpack.c.b16 %v1167, %v1158
    %v1411 = vpack.c.b16 %v1168, %v1159
    %v1412 = vpack.c.b16 %v1169, %v1160
    %v1413 = vpack.c.b16 %v1170, %v1161
    %v1414 = vpack.c.b16 %v1171, %v1162
    %v1415 = vpack.c.b16 %v1181, %v1172
    %v1416 = vpack.c.b16 %v1182, %v1173
    %v1417 = vpack.c.b16 %v1183, %v1174
    %v1418 = vpack.c.b16 %v1184, %v1175
    %v1419 = vpack.c.b16 %v1185, %v1176
    %v1420 = vpack.c.b16 %v1186, %v1177
    %v1421 = vpack.c.b16 %v1187, %v1178
    %v1422 = vpack.c.b16 %v1188, %v1179
    %v1423 = vpack.c.b16 %v1189, %v1180
    %v1424 = vpack.c.b16 %v1199, %v1190
    %v1425 = vpack.c.b16 %v1200, %v1191
    %v1426 = vpack.c.b16 %v1201, %v1192
    %v1427 = vpack.c.b16 %v1202, %v1193
    %v1428 = vpack.c.b16 %v1203, %v1194
    %v1429 = vpack.c.b16 %v1204, %v1195
    %v1430 = vpack.c.b16 %v1205, %v1196
    %v1431 = vpack.c.b16 %v1206, %v1197
    %v1432 = vpack.c.b16 %v1207, %v1198
    %v1433 = vpack.c.b16 %v1217, %v1208
    %v1434 = vpack.c.b16 %v1218, %v1209
    %v1435 = vpack.c.b16 %v1219, %v1210
    %v1436 = vpack.c.b16 %v1220, %v1211
    %v1437 = vpack.c.b16 %v1221, %v1212
    %v1438 = vpack.c.b16 %v1222, %v1213
    %v1439 = vpack.c.b16 %v1223, %v1214
    %v1440 = vpack.c.b16 %v1224, %v1215
    %v1441 = vpack.c.b16 %v1225, %v1216
    %1658 = vmatpush.bf16.msra.mxu0 %v1289
    %1659 = vmatpush.bf16.msra.mxu0 %v1280
    %1660 = vmatpush.bf16.msra.mxu0 %v1271
    %1661 = vmatpush.bf16.msra.mxu0 %v1262
    %1662 = vmatpush.bf16.msra.mxu0 %v1253
    %1663 = vmatpush.bf16.msra.mxu0 %v1244
    %1664 = vmatpush.bf16.msra.mxu0 %v1235
    %1665 = vmatpush.bf16.msra.mxu0 %v1226
    %1666 = vmatmul.bf16.gmra.mxu0 %v302
    %v1667 = vpop.f32.mrf.mxu0
    %v1668 = vadd.f32 0.0, %v1667
    %v1669 = vpop.f32.mrf.mxu0
    %v1670 = vadd.f32 0.0, %v1669
    %1671 = vmatmul.bf16.gmra.mxu0 %v305
    %v1672 = vpop.f32.mrf.mxu0
    %v1673 = vadd.f32 0.0, %v1672
    %v1674 = vpop.f32.mrf.mxu0
    %v1675 = vadd.f32 0.0, %v1674
    %1676 = vmatmul.bf16.gmra.mxu0 %v308
    %v1677 = vpop.f32.mrf.mxu0
    %v1678 = vadd.f32 0.0, %v1677
    %v1679 = vpop.f32.mrf.mxu0
    %v1680 = vadd.f32 0.0, %v1679
    %1681 = vmatmul.bf16.gmra.mxu0 %v311
    %v1682 = vpop.f32.mrf.mxu0
    %v1683 = vadd.f32 0.0, %v1682
    %v1684 = vpop.f32.mrf.mxu0
    %v1685 = vadd.f32 0.0, %v1684
    %1686 = vdwg.mxu0
    %1687 = vmatpush.bf16.msra.mxu0 %v1361
    %1688 = vmatpush.bf16.msra.mxu0 %v1352
    %1689 = vmatpush.bf16.msra.mxu0 %v1343
    %1690 = vmatpush.bf16.msra.mxu0 %v1334
    %1691 = vmatpush.bf16.msra.mxu0 %v1325
    %1692 = vmatpush.bf16.msra.mxu0 %v1316
    %1693 = vmatpush.bf16.msra.mxu0 %v1307
    %1694 = vmatpush.bf16.msra.mxu0 %v1298
    %1695 = vmatmul.bf16.gmra.mxu0 %v303
    %v1696 = vpop.f32.mrf.mxu0
    %v1697 = vadd.f32 %v1668, %v1696
    %v1698 = vpop.f32.mrf.mxu0
    %v1699 = vadd.f32 %v1670, %v1698
    %1700 = vmatmul.bf16.gmra.mxu0 %v306
    %v1701 = vpop.f32.mrf.mxu0
    %v1702 = vadd.f32 %v1673, %v1701
    %v1703 = vpop.f32.mrf.mxu0
    %v1704 = vadd.f32 %v1675, %v1703
    %1705 = vmatmul.bf16.gmra.mxu0 %v309
    %v1706 = vpop.f32.mrf.mxu0
    %v1707 = vadd.f32 %v1678, %v1706
    %v1708 = vpop.f32.mrf.mxu0
    %v1709 = vadd.f32 %v1680, %v1708
    %1710 = vmatmul.bf16.gmra.mxu0 %v312
    %v1711 = vpop.f32.mrf.mxu0
    %v1712 = vadd.f32 %v1683, %v1711
    %v1713 = vpop.f32.mrf.mxu0
    %v1714 = vadd.f32 %v1685, %v1713
    %1715 = vdwg.mxu0
    %1716 = vmatpush.bf16.msra.mxu0 %v1433
    %1717 = vmatpush.bf16.msra.mxu0 %v1424
    %1718 = vmatpush.bf16.msra.mxu0 %v1415
    %1719 = vmatpush.bf16.msra.mxu0 %v1406
    %1720 = vmatpush.bf16.msra.mxu0 %v1397
    %1721 = vmatpush.bf16.msra.mxu0 %v1388
    %1722 = vmatpush.bf16.msra.mxu0 %v1379
    %1723 = vmatpush.bf16.msra.mxu0 %v1370
    %1724 = vmatmul.bf16.gmra.mxu0 %v304
    %v1725 = vpop.f32.mrf.mxu0
    %v1726 = vadd.f32 %v1697, %v1725
    %v1727 = vpop.f32.mrf.mxu0
    %v1728 = vadd.f32 %v1699, %v1727
    %1729 = vmatmul.bf16.gmra.mxu0 %v307
    %v1730 = vpop.f32.mrf.mxu0
    %v1731 = vadd.f32 %v1702, %v1730
    %v1732 = vpop.f32.mrf.mxu0
    %v1733 = vadd.f32 %v1704, %v1732
    %1734 = vmatmul.bf16.gmra.mxu0 %v310
    %v1735 = vpop.f32.mrf.mxu0
    %v1736 = vadd.f32 %v1707, %v1735
    %v1737 = vpop.f32.mrf.mxu0
    %v1738 = vadd.f32 %v1709, %v1737
    %1739 = vmatmul.bf16.gmra.mxu0 %v313
    %v1740 = vpop.f32.mrf.mxu0
    %v1741 = vadd.f32 %v1712, %v1740
    %v1742 = vpop.f32.mrf.mxu0
    %v1743 = vadd.f32 %v1714, %v1742
    %1744 = vdwg.mxu0
    %1745 = vmatpush.bf16.msra.mxu0 %v1290
    %1746 = vmatpush.bf16.msra.mxu0 %v1281
    %1747 = vmatpush.bf16.msra.mxu0 %v1272
    %1748 = vmatpush.bf16.msra.mxu0 %v1263
    %1749 = vmatpush.bf16.msra.mxu0 %v1254
    %1750 = vmatpush.bf16.msra.mxu0 %v1245
    %1751 = vmatpush.bf16.msra.mxu0 %v1236
    %1752 = vmatpush.bf16.msra.mxu0 %v1227
    %1753 = vmatmul.bf16.gmra.mxu0 %v302
    %v1754 = vpop.f32.mrf.mxu0
    %v1755 = vadd.f32 0.0, %v1754
    %v1756 = vpop.f32.mrf.mxu0
    %v1757 = vadd.f32 0.0, %v1756
    %1758 = vmatmul.bf16.gmra.mxu0 %v305
    %v1759 = vpop.f32.mrf.mxu0
    %v1760 = vadd.f32 0.0, %v1759
    %v1761 = vpop.f32.mrf.mxu0
    %v1762 = vadd.f32 0.0, %v1761
    %1763 = vmatmul.bf16.gmra.mxu0 %v308
    %v1764 = vpop.f32.mrf.mxu0
    %v1765 = vadd.f32 0.0, %v1764
    %v1766 = vpop.f32.mrf.mxu0
    %v1767 = vadd.f32 0.0, %v1766
    %1768 = vmatmul.bf16.gmra.mxu0 %v311
    %v1769 = vpop.f32.mrf.mxu0
    %v1770 = vadd.f32 0.0, %v1769
    %v1771 = vpop.f32.mrf.mxu0
    %v1772 = vadd.f32 0.0, %v1771
    %1773 = vdwg.mxu0
    %1774 = vmatpush.bf16.msra.mxu0 %v1362
    %1775 = vmatpush.bf16.msra.mxu0 %v1353
    %1776 = vmatpush.bf16.msra.mxu0 %v1344
    %1777 = vmatpush.bf16.msra.mxu0 %v1335
    %1778 = vmatpush.bf16.msra.mxu0 %v1326
    %1779 = vmatpush.bf16.msra.mxu0 %v1317
    %1780 = vmatpush.bf16.msra.mxu0 %v1308
    %1781 = vmatpush.bf16.msra.mxu0 %v1299
    %1782 = vmatmul.bf16.gmra.mxu0 %v303
    %v1783 = vpop.f32.mrf.mxu0
    %v1784 = vadd.f32 %v1755, %v1783
    %v1785 = vpop.f32.mrf.mxu0
    %v1786 = vadd.f32 %v1757, %v1785
    %1787 = vmatmul.bf16.gmra.mxu0 %v306
    %v1788 = vpop.f32.mrf.mxu0
    %v1789 = vadd.f32 %v1760, %v1788
    %v1790 = vpop.f32.mrf.mxu0
    %v1791 = vadd.f32 %v1762, %v1790
    %1792 = vmatmul.bf16.gmra.mxu0 %v309
    %v1793 = vpop.f32.mrf.mxu0
    %v1794 = vadd.f32 %v1765, %v1793
    %v1795 = vpop.f32.mrf.mxu0
    %v1796 = vadd.f32 %v1767, %v1795
    %1797 = vmatmul.bf16.gmra.mxu0 %v312
    %v1798 = vpop.f32.mrf.mxu0
    %v1799 = vadd.f32 %v1770, %v1798
    %v1800 = vpop.f32.mrf.mxu0
    %v1801 = vadd.f32 %v1772, %v1800
    %1802 = vdwg.mxu0
    %1803 = vmatpush.bf16.msra.mxu0 %v1434
    %1804 = vmatpush.bf16.msra.mxu0 %v1425
    %1805 = vmatpush.bf16.msra.mxu0 %v1416
    %1806 = vmatpush.bf16.msra.mxu0 %v1407
    %1807 = vmatpush.bf16.msra.mxu0 %v1398
    %1808 = vmatpush.bf16.msra.mxu0 %v1389
    %1809 = vmatpush.bf16.msra.mxu0 %v1380
    %1810 = vmatpush.bf16.msra.mxu0 %v1371
    %1811 = vmatmul.bf16.gmra.mxu0 %v304
    %v1812 = vpop.f32.mrf.mxu0
    %v1813 = vadd.f32 %v1784, %v1812
    %v1814 = vpop.f32.mrf.mxu0
    %v1815 = vadd.f32 %v1786, %v1814
    %1816 = vmatmul.bf16.gmra.mxu0 %v307
    %v1817 = vpop.f32.mrf.mxu0
    %v1818 = vadd.f32 %v1789, %v1817
    %v1819 = vpop.f32.mrf.mxu0
    %v1820 = vadd.f32 %v1791, %v1819
    %1821 = vmatmul.bf16.gmra.mxu0 %v310
    %v1822 = vpop.f32.mrf.mxu0
    %v1823 = vadd.f32 %v1794, %v1822
    %v1824 = vpop.f32.mrf.mxu0
    %v1825 = vadd.f32 %v1796, %v1824
    %1826 = vmatmul.bf16.gmra.mxu0 %v313
    %v1827 = vpop.f32.mrf.mxu0
    %v1828 = vadd.f32 %v1799, %v1827
    %v1829 = vpop.f32.mrf.mxu0
    %v1830 = vadd.f32 %v1801, %v1829
    %1831 = vdwg.mxu0
    %1832 = vmatpush.bf16.msra.mxu0 %v1291
    %1833 = vmatpush.bf16.msra.mxu0 %v1282
    %1834 = vmatpush.bf16.msra.mxu0 %v1273
    %1835 = vmatpush.bf16.msra.mxu0 %v1264
    %1836 = vmatpush.bf16.msra.mxu0 %v1255
    %1837 = vmatpush.bf16.msra.mxu0 %v1246
    %1838 = vmatpush.bf16.msra.mxu0 %v1237
    %1839 = vmatpush.bf16.msra.mxu0 %v1228
    %1840 = vmatmul.bf16.gmra.mxu0 %v302
    %v1841 = vpop.f32.mrf.mxu0
    %v1842 = vadd.f32 0.0, %v1841
    %v1843 = vpop.f32.mrf.mxu0
    %v1844 = vadd.f32 0.0, %v1843
    %1845 = vmatmul.bf16.gmra.mxu0 %v305
    %v1846 = vpop.f32.mrf.mxu0
    %v1847 = vadd.f32 0.0, %v1846
    %v1848 = vpop.f32.mrf.mxu0
    %v1849 = vadd.f32 0.0, %v1848
    %1850 = vmatmul.bf16.gmra.mxu0 %v308
    %v1851 = vpop.f32.mrf.mxu0
    %v1852 = vadd.f32 0.0, %v1851
    %v1853 = vpop.f32.mrf.mxu0
    %v1854 = vadd.f32 0.0, %v1853
    %1855 = vmatmul.bf16.gmra.mxu0 %v311
    %v1856 = vpop.f32.mrf.mxu0
    %v1857 = vadd.f32 0.0, %v1856
    %v1858 = vpop.f32.mrf.mxu0
    %v1859 = vadd.f32 0.0, %v1858
    %1860 = vdwg.mxu0
    %1861 = vmatpush.bf16.msra.mxu0 %v1363
    %1862 = vmatpush.bf16.msra.mxu0 %v1354
    %1863 = vmatpush.bf16.msra.mxu0 %v1345
    %1864 = vmatpush.bf16.msra.mxu0 %v1336
    %1865 = vmatpush.bf16.msra.mxu0 %v1327
    %1866 = vmatpush.bf16.msra.mxu0 %v1318
    %1867 = vmatpush.bf16.msra.mxu0 %v1309
    %1868 = vmatpush.bf16.msra.mxu0 %v1300
    %1869 = vmatmul.bf16.gmra.mxu0 %v303
    %v1870 = vpop.f32.mrf.mxu0
    %v1871 = vadd.f32 %v1842, %v1870
    %v1872 = vpop.f32.mrf.mxu0
    %v1873 = vadd.f32 %v1844, %v1872
    %1874 = vmatmul.bf16.gmra.mxu0 %v306
    %v1875 = vpop.f32.mrf.mxu0
    %v1876 = vadd.f32 %v1847, %v1875
    %v1877 = vpop.f32.mrf.mxu0
    %v1878 = vadd.f32 %v1849, %v1877
    %1879 = vmatmul.bf16.gmra.mxu0 %v309
    %v1880 = vpop.f32.mrf.mxu0
    %v1881 = vadd.f32 %v1852, %v1880
    %v1882 = vpop.f32.mrf.mxu0
    %v1883 = vadd.f32 %v1854, %v1882
    %1884 = vmatmul.bf16.gmra.mxu0 %v312
    %v1885 = vpop.f32.mrf.mxu0
    %v1886 = vadd.f32 %v1857, %v1885
    %v1887 = vpop.f32.mrf.mxu0
    %v1888 = vadd.f32 %v1859, %v1887
    %1889 = vdwg.mxu0
    %1890 = vmatpush.bf16.msra.mxu0 %v1435
    %1891 = vmatpush.bf16.msra.mxu0 %v1426
    %1892 = vmatpush.bf16.msra.mxu0 %v1417
    %1893 = vmatpush.bf16.msra.mxu0 %v1408
    %1894 = vmatpush.bf16.msra.mxu0 %v1399
    %1895 = vmatpush.bf16.msra.mxu0 %v1390
    %1896 = vmatpush.bf16.msra.mxu0 %v1381
    %1897 = vmatpush.bf16.msra.mxu0 %v1372
    %1898 = vmatmul.bf16.gmra.mxu0 %v304
    %v1899 = vpop.f32.mrf.mxu0
    %v1900 = vadd.f32 %v1871, %v1899
    %v1901 = vpop.f32.mrf.mxu0
    %v1902 = vadd.f32 %v1873, %v1901
    %1903 = vmatmul.bf16.gmra.mxu0 %v307
    %v1904 = vpop.f32.mrf.mxu0
    %v1905 = vadd.f32 %v1876, %v1904
    %v1906 = vpop.f32.mrf.mxu0
    %v1907 = vadd.f32 %v1878, %v1906
    %1908 = vmatmul.bf16.gmra.mxu0 %v310
    %v1909 = vpop.f32.mrf.mxu0
    %v1910 = vadd.f32 %v1881, %v1909
    %v1911 = vpop.f32.mrf.mxu0
    %v1912 = vadd.f32 %v1883, %v1911
    %1913 = vmatmul.bf16.gmra.mxu0 %v313
    %v1914 = vpop.f32.mrf.mxu0
    %v1915 = vadd.f32 %v1886, %v1914
    %v1916 = vpop.f32.mrf.mxu0
    %v1917 = vadd.f32 %v1888, %v1916
    %1918 = vdwg.mxu0
    %1919 = vmatpush.bf16.msra.mxu0 %v1292
    %1920 = vmatpush.bf16.msra.mxu0 %v1283
    %1921 = vmatpush.bf16.msra.mxu0 %v1274
    %1922 = vmatpush.bf16.msra.mxu0 %v1265
    %1923 = vmatpush.bf16.msra.mxu0 %v1256
    %1924 = vmatpush.bf16.msra.mxu0 %v1247
    %1925 = vmatpush.bf16.msra.mxu0 %v1238
    %1926 = vmatpush.bf16.msra.mxu0 %v1229
    %1927 = vmatmul.bf16.gmra.mxu0 %v302
    %v1928 = vpop.f32.mrf.mxu0
    %v1929 = vadd.f32 0.0, %v1928
    %v1930 = vpop.f32.mrf.mxu0
    %v1931 = vadd.f32 0.0, %v1930
    %1932 = vmatmul.bf16.gmra.mxu0 %v305
    %v1933 = vpop.f32.mrf.mxu0
    %v1934 = vadd.f32 0.0, %v1933
    %v1935 = vpop.f32.mrf.mxu0
    %v1936 = vadd.f32 0.0, %v1935
    %1937 = vmatmul.bf16.gmra.mxu0 %v308
    %v1938 = vpop.f32.mrf.mxu0
    %v1939 = vadd.f32 0.0, %v1938
    %v1940 = vpop.f32.mrf.mxu0
    %v1941 = vadd.f32 0.0, %v1940
    %1942 = vmatmul.bf16.gmra.mxu0 %v311
    %v1943 = vpop.f32.mrf.mxu0
    %v1944 = vadd.f32 0.0, %v1943
    %v1945 = vpop.f32.mrf.mxu0
    %v1946 = vadd.f32 0.0, %v1945
    %1947 = vdwg.mxu0
    %1948 = vmatpush.bf16.msra.mxu0 %v1364
    %1949 = vmatpush.bf16.msra.mxu0 %v1355
    %1950 = vmatpush.bf16.msra.mxu0 %v1346
    %1951 = vmatpush.bf16.msra.mxu0 %v1337
    %1952 = vmatpush.bf16.msra.mxu0 %v1328
    %1953 = vmatpush.bf16.msra.mxu0 %v1319
    %1954 = vmatpush.bf16.msra.mxu0 %v1310
    %1955 = vmatpush.bf16.msra.mxu0 %v1301
    %1956 = vmatmul.bf16.gmra.mxu0 %v303
    %v1957 = vpop.f32.mrf.mxu0
    %v1958 = vadd.f32 %v1929, %v1957
    %v1959 = vpop.f32.mrf.mxu0
    %v1960 = vadd.f32 %v1931, %v1959
    %1961 = vmatmul.bf16.gmra.mxu0 %v306
    %v1962 = vpop.f32.mrf.mxu0
    %v1963 = vadd.f32 %v1934, %v1962
    %v1964 = vpop.f32.mrf.mxu0
    %v1965 = vadd.f32 %v1936, %v1964
    %1966 = vmatmul.bf16.gmra.mxu0 %v309
    %v1967 = vpop.f32.mrf.mxu0
    %v1968 = vadd.f32 %v1939, %v1967
    %v1969 = vpop.f32.mrf.mxu0
    %v1970 = vadd.f32 %v1941, %v1969
    %1971 = vmatmul.bf16.gmra.mxu0 %v312
    %v1972 = vpop.f32.mrf.mxu0
    %v1973 = vadd.f32 %v1944, %v1972
    %v1974 = vpop.f32.mrf.mxu0
    %v1975 = vadd.f32 %v1946, %v1974
    %1976 = vdwg.mxu0
    %1977 = vmatpush.bf16.msra.mxu0 %v1436
    %1978 = vmatpush.bf16.msra.mxu0 %v1427
    %1979 = vmatpush.bf16.msra.mxu0 %v1418
    %1980 = vmatpush.bf16.msra.mxu0 %v1409
    %1981 = vmatpush.bf16.msra.mxu0 %v1400
    %1982 = vmatpush.bf16.msra.mxu0 %v1391
    %1983 = vmatpush.bf16.msra.mxu0 %v1382
    %1984 = vmatpush.bf16.msra.mxu0 %v1373
    %1985 = vmatmul.bf16.gmra.mxu0 %v304
    %v1986 = vpop.f32.mrf.mxu0
    %v1987 = vadd.f32 %v1958, %v1986
    %v1988 = vpop.f32.mrf.mxu0
    %v1989 = vadd.f32 %v1960, %v1988
    %1990 = vmatmul.bf16.gmra.mxu0 %v307
    %v1991 = vpop.f32.mrf.mxu0
    %v1992 = vadd.f32 %v1963, %v1991
    %v1993 = vpop.f32.mrf.mxu0
    %v1994 = vadd.f32 %v1965, %v1993
    %1995 = vmatmul.bf16.gmra.mxu0 %v310
    %v1996 = vpop.f32.mrf.mxu0
    %v1997 = vadd.f32 %v1968, %v1996
    %v1998 = vpop.f32.mrf.mxu0
    %v1999 = vadd.f32 %v1970, %v1998
    %2000 = vmatmul.bf16.gmra.mxu0 %v313
    %v2001 = vpop.f32.mrf.mxu0
    %v2002 = vadd.f32 %v1973, %v2001
    %v2003 = vpop.f32.mrf.mxu0
    %v2004 = vadd.f32 %v1975, %v2003
    %2005 = vdwg.mxu0
    %2006 = vmatpush.bf16.msra.mxu0 %v1293
    %2007 = vmatpush.bf16.msra.mxu0 %v1284
    %2008 = vmatpush.bf16.msra.mxu0 %v1275
    %2009 = vmatpush.bf16.msra.mxu0 %v1266
    %2010 = vmatpush.bf16.msra.mxu0 %v1257
    %2011 = vmatpush.bf16.msra.mxu0 %v1248
    %2012 = vmatpush.bf16.msra.mxu0 %v1239
    %2013 = vmatpush.bf16.msra.mxu0 %v1230
    %2014 = vmatmul.bf16.gmra.mxu0 %v302
    %v2015 = vpop.f32.mrf.mxu0
    %v2016 = vadd.f32 0.0, %v2015
    %v2017 = vpop.f32.mrf.mxu0
    %v2018 = vadd.f32 0.0, %v2017
    %2019 = vmatmul.bf16.gmra.mxu0 %v305
    %v2020 = vpop.f32.mrf.mxu0
    %v2021 = vadd.f32 0.0, %v2020
    %v2022 = vpop.f32.mrf.mxu0
    %v2023 = vadd.f32 0.0, %v2022
    %2024 = vmatmul.bf16.gmra.mxu0 %v308
    %v2025 = vpop.f32.mrf.mxu0
    %v2026 = vadd.f32 0.0, %v2025
    %v2027 = vpop.f32.mrf.mxu0
    %v2028 = vadd.f32 0.0, %v2027
    %2029 = vmatmul.bf16.gmra.mxu0 %v311
    %v2030 = vpop.f32.mrf.mxu0
    %v2031 = vadd.f32 0.0, %v2030
    %v2032 = vpop.f32.mrf.mxu0
    %v2033 = vadd.f32 0.0, %v2032
    %2034 = vdwg.mxu0
    %2035 = vmatpush.bf16.msra.mxu0 %v1365
    %2036 = vmatpush.bf16.msra.mxu0 %v1356
    %2037 = vmatpush.bf16.msra.mxu0 %v1347
    %2038 = vmatpush.bf16.msra.mxu0 %v1338
    %2039 = vmatpush.bf16.msra.mxu0 %v1329
    %2040 = vmatpush.bf16.msra.mxu0 %v1320
    %2041 = vmatpush.bf16.msra.mxu0 %v1311
    %2042 = vmatpush.bf16.msra.mxu0 %v1302
    %2043 = vmatmul.bf16.gmra.mxu0 %v303
    %v2044 = vpop.f32.mrf.mxu0
    %v2045 = vadd.f32 %v2016, %v2044
    %v2046 = vpop.f32.mrf.mxu0
    %v2047 = vadd.f32 %v2018, %v2046
    %2048 = vmatmul.bf16.gmra.mxu0 %v306
    %v2049 = vpop.f32.mrf.mxu0
    %v2050 = vadd.f32 %v2021, %v2049
    %v2051 = vpop.f32.mrf.mxu0
    %v2052 = vadd.f32 %v2023, %v2051
    %2053 = vmatmul.bf16.gmra.mxu0 %v309
    %v2054 = vpop.f32.mrf.mxu0
    %v2055 = vadd.f32 %v2026, %v2054
    %v2056 = vpop.f32.mrf.mxu0
    %v2057 = vadd.f32 %v2028, %v2056
    %2058 = vmatmul.bf16.gmra.mxu0 %v312
    %v2059 = vpop.f32.mrf.mxu0
    %v2060 = vadd.f32 %v2031, %v2059
    %v2061 = vpop.f32.mrf.mxu0
    %v2062 = vadd.f32 %v2033, %v2061
    %2063 = vdwg.mxu0
    %2064 = vmatpush.bf16.msra.mxu0 %v1437
    %2065 = vmatpush.bf16.msra.mxu0 %v1428
    %2066 = vmatpush.bf16.msra.mxu0 %v1419
    %2067 = vmatpush.bf16.msra.mxu0 %v1410
    %2068 = vmatpush.bf16.msra.mxu0 %v1401
    %2069 = vmatpush.bf16.msra.mxu0 %v1392
    %2070 = vmatpush.bf16.msra.mxu0 %v1383
    %2071 = vmatpush.bf16.msra.mxu0 %v1374
    %2072 = vmatmul.bf16.gmra.mxu0 %v304
    %v2073 = vpop.f32.mrf.mxu0
    %v2074 = vadd.f32 %v2045, %v2073
    %v2075 = vpop.f32.mrf.mxu0
    %v2076 = vadd.f32 %v2047, %v2075
    %2077 = vmatmul.bf16.gmra.mxu0 %v307
    %v2078 = vpop.f32.mrf.mxu0
    %v2079 = vadd.f32 %v2050, %v2078
    %v2080 = vpop.f32.mrf.mxu0
    %v2081 = vadd.f32 %v2052, %v2080
    %2082 = vmatmul.bf16.gmra.mxu0 %v310
    %v2083 = vpop.f32.mrf.mxu0
    %v2084 = vadd.f32 %v2055, %v2083
    %v2085 = vpop.f32.mrf.mxu0
    %v2086 = vadd.f32 %v2057, %v2085
    %2087 = vmatmul.bf16.gmra.mxu0 %v313
    %v2088 = vpop.f32.mrf.mxu0
    %v2089 = vadd.f32 %v2060, %v2088
    %v2090 = vpop.f32.mrf.mxu0
    %v2091 = vadd.f32 %v2062, %v2090
    %2092 = vdwg.mxu0
    %2093 = vmatpush.bf16.msra.mxu0 %v1294
    %2094 = vmatpush.bf16.msra.mxu0 %v1285
    %2095 = vmatpush.bf16.msra.mxu0 %v1276
    %2096 = vmatpush.bf16.msra.mxu0 %v1267
    %2097 = vmatpush.bf16.msra.mxu0 %v1258
    %2098 = vmatpush.bf16.msra.mxu0 %v1249
    %2099 = vmatpush.bf16.msra.mxu0 %v1240
    %2100 = vmatpush.bf16.msra.mxu0 %v1231
    %2101 = vmatmul.bf16.gmra.mxu0 %v302
    %v2102 = vpop.f32.mrf.mxu0
    %v2103 = vadd.f32 0.0, %v2102
    %v2104 = vpop.f32.mrf.mxu0
    %v2105 = vadd.f32 0.0, %v2104
    %2106 = vmatmul.bf16.gmra.mxu0 %v305
    %v2107 = vpop.f32.mrf.mxu0
    %v2108 = vadd.f32 0.0, %v2107
    %v2109 = vpop.f32.mrf.mxu0
    %v2110 = vadd.f32 0.0, %v2109
    %2111 = vmatmul.bf16.gmra.mxu0 %v308
    %v2112 = vpop.f32.mrf.mxu0
    %v2113 = vadd.f32 0.0, %v2112
    %v2114 = vpop.f32.mrf.mxu0
    %v2115 = vadd.f32 0.0, %v2114
    %2116 = vmatmul.bf16.gmra.mxu0 %v311
    %v2117 = vpop.f32.mrf.mxu0
    %v2118 = vadd.f32 0.0, %v2117
    %v2119 = vpop.f32.mrf.mxu0
    %v2120 = vadd.f32 0.0, %v2119
    %2121 = vdwg.mxu0
    %2122 = vmatpush.bf16.msra.mxu0 %v1366
    %2123 = vmatpush.bf16.msra.mxu0 %v1357
    %2124 = vmatpush.bf16.msra.mxu0 %v1348
    %2125 = vmatpush.bf16.msra.mxu0 %v1339
    %2126 = vmatpush.bf16.msra.mxu0 %v1330
    %2127 = vmatpush.bf16.msra.mxu0 %v1321
    %2128 = vmatpush.bf16.msra.mxu0 %v1312
    %2129 = vmatpush.bf16.msra.mxu0 %v1303
    %2130 = vmatmul.bf16.gmra.mxu0 %v303
    %v2131 = vpop.f32.mrf.mxu0
    %v2132 = vadd.f32 %v2103, %v2131
    %v2133 = vpop.f32.mrf.mxu0
    %v2134 = vadd.f32 %v2105, %v2133
    %2135 = vmatmul.bf16.gmra.mxu0 %v306
    %v2136 = vpop.f32.mrf.mxu0
    %v2137 = vadd.f32 %v2108, %v2136
    %v2138 = vpop.f32.mrf.mxu0
    %v2139 = vadd.f32 %v2110, %v2138
    %2140 = vmatmul.bf16.gmra.mxu0 %v309
    %v2141 = vpop.f32.mrf.mxu0
    %v2142 = vadd.f32 %v2113, %v2141
    %v2143 = vpop.f32.mrf.mxu0
    %v2144 = vadd.f32 %v2115, %v2143
    %2145 = vmatmul.bf16.gmra.mxu0 %v312
    %v2146 = vpop.f32.mrf.mxu0
    %v2147 = vadd.f32 %v2118, %v2146
    %v2148 = vpop.f32.mrf.mxu0
    %v2149 = vadd.f32 %v2120, %v2148
    %2150 = vdwg.mxu0
    %2151 = vmatpush.bf16.msra.mxu0 %v1438
    %2152 = vmatpush.bf16.msra.mxu0 %v1429
    %2153 = vmatpush.bf16.msra.mxu0 %v1420
    %2154 = vmatpush.bf16.msra.mxu0 %v1411
    %2155 = vmatpush.bf16.msra.mxu0 %v1402
    %2156 = vmatpush.bf16.msra.mxu0 %v1393
    %2157 = vmatpush.bf16.msra.mxu0 %v1384
    %2158 = vmatpush.bf16.msra.mxu0 %v1375
    %2159 = vmatmul.bf16.gmra.mxu0 %v304
    %v2160 = vpop.f32.mrf.mxu0
    %v2161 = vadd.f32 %v2132, %v2160
    %v2162 = vpop.f32.mrf.mxu0
    %v2163 = vadd.f32 %v2134, %v2162
    %2164 = vmatmul.bf16.gmra.mxu0 %v307
    %v2165 = vpop.f32.mrf.mxu0
    %v2166 = vadd.f32 %v2137, %v2165
    %v2167 = vpop.f32.mrf.mxu0
    %v2168 = vadd.f32 %v2139, %v2167
    %2169 = vmatmul.bf16.gmra.mxu0 %v310
    %v2170 = vpop.f32.mrf.mxu0
    %v2171 = vadd.f32 %v2142, %v2170
    %v2172 = vpop.f32.mrf.mxu0
    %v2173 = vadd.f32 %v2144, %v2172
    %2174 = vmatmul.bf16.gmra.mxu0 %v313
    %v2175 = vpop.f32.mrf.mxu0
    %v2176 = vadd.f32 %v2147, %v2175
    %v2177 = vpop.f32.mrf.mxu0
    %v2178 = vadd.f32 %v2149, %v2177
    %2179 = vdwg.mxu0
    %2180 = vmatpush.bf16.msra.mxu0 %v1295
    %2181 = vmatpush.bf16.msra.mxu0 %v1286
    %2182 = vmatpush.bf16.msra.mxu0 %v1277
    %2183 = vmatpush.bf16.msra.mxu0 %v1268
    %2184 = vmatpush.bf16.msra.mxu0 %v1259
    %2185 = vmatpush.bf16.msra.mxu0 %v1250
    %2186 = vmatpush.bf16.msra.mxu0 %v1241
    %2187 = vmatpush.bf16.msra.mxu0 %v1232
    %2188 = vmatmul.bf16.gmra.mxu0 %v302
    %v2189 = vpop.f32.mrf.mxu0
    %v2190 = vadd.f32 0.0, %v2189
    %v2191 = vpop.f32.mrf.mxu0
    %v2192 = vadd.f32 0.0, %v2191
    %2193 = vmatmul.bf16.gmra.mxu0 %v305
    %v2194 = vpop.f32.mrf.mxu0
    %v2195 = vadd.f32 0.0, %v2194
    %v2196 = vpop.f32.mrf.mxu0
    %v2197 = vadd.f32 0.0, %v2196
    %2198 = vmatmul.bf16.gmra.mxu0 %v308
    %v2199 = vpop.f32.mrf.mxu0
    %v2200 = vadd.f32 0.0, %v2199
    %v2201 = vpop.f32.mrf.mxu0
    %v2202 = vadd.f32 0.0, %v2201
    %2203 = vmatmul.bf16.gmra.mxu0 %v311
    %v2204 = vpop.f32.mrf.mxu0
    %v2205 = vadd.f32 0.0, %v2204
    %v2206 = vpop.f32.mrf.mxu0
    %v2207 = vadd.f32 0.0, %v2206
    %2208 = vdwg.mxu0
    %2209 = vmatpush.bf16.msra.mxu0 %v1367
    %2210 = vmatpush.bf16.msra.mxu0 %v1358
    %2211 = vmatpush.bf16.msra.mxu0 %v1349
    %2212 = vmatpush.bf16.msra.mxu0 %v1340
    %2213 = vmatpush.bf16.msra.mxu0 %v1331
    %2214 = vmatpush.bf16.msra.mxu0 %v1322
    %2215 = vmatpush.bf16.msra.mxu0 %v1313
    %2216 = vmatpush.bf16.msra.mxu0 %v1304
    %2217 = vmatmul.bf16.gmra.mxu0 %v303
    %v2218 = vpop.f32.mrf.mxu0
    %v2219 = vadd.f32 %v2190, %v2218
    %v2220 = vpop.f32.mrf.mxu0
    %v2221 = vadd.f32 %v2192, %v2220
    %2222 = vmatmul.bf16.gmra.mxu0 %v306
    %v2223 = vpop.f32.mrf.mxu0
    %v2224 = vadd.f32 %v2195, %v2223
    %v2225 = vpop.f32.mrf.mxu0
    %v2226 = vadd.f32 %v2197, %v2225
    %2227 = vmatmul.bf16.gmra.mxu0 %v309
    %v2228 = vpop.f32.mrf.mxu0
    %v2229 = vadd.f32 %v2200, %v2228
    %v2230 = vpop.f32.mrf.mxu0
    %v2231 = vadd.f32 %v2202, %v2230
    %2232 = vmatmul.bf16.gmra.mxu0 %v312
    %v2233 = vpop.f32.mrf.mxu0
    %v2234 = vadd.f32 %v2205, %v2233
    %v2235 = vpop.f32.mrf.mxu0
    %v2236 = vadd.f32 %v2207, %v2235
    %2237 = vdwg.mxu0
    %2238 = vmatpush.bf16.msra.mxu0 %v1439
    %2239 = vmatpush.bf16.msra.mxu0 %v1430
    %2240 = vmatpush.bf16.msra.mxu0 %v1421
    %2241 = vmatpush.bf16.msra.mxu0 %v1412
    %2242 = vmatpush.bf16.msra.mxu0 %v1403
    %2243 = vmatpush.bf16.msra.mxu0 %v1394
    %2244 = vmatpush.bf16.msra.mxu0 %v1385
    %2245 = vmatpush.bf16.msra.mxu0 %v1376
    %2246 = vmatmul.bf16.gmra.mxu0 %v304
    %v2247 = vpop.f32.mrf.mxu0
    %v2248 = vadd.f32 %v2219, %v2247
    %v2249 = vpop.f32.mrf.mxu0
    %v2250 = vadd.f32 %v2221, %v2249
    %2251 = vmatmul.bf16.gmra.mxu0 %v307
    %v2252 = vpop.f32.mrf.mxu0
    %v2253 = vadd.f32 %v2224, %v2252
    %v2254 = vpop.f32.mrf.mxu0
    %v2255 = vadd.f32 %v2226, %v2254
    %2256 = vmatmul.bf16.gmra.mxu0 %v310
    %v2257 = vpop.f32.mrf.mxu0
    %v2258 = vadd.f32 %v2229, %v2257
    %v2259 = vpop.f32.mrf.mxu0
    %v2260 = vadd.f32 %v2231, %v2259
    %2261 = vmatmul.bf16.gmra.mxu0 %v313
    %v2262 = vpop.f32.mrf.mxu0
    %v2263 = vadd.f32 %v2234, %v2262
    %v2264 = vpop.f32.mrf.mxu0
    %v2265 = vadd.f32 %v2236, %v2264
    %2266 = vdwg.mxu0
    %2267 = vmatpush.bf16.msra.mxu0 %v1296
    %2268 = vmatpush.bf16.msra.mxu0 %v1287
    %2269 = vmatpush.bf16.msra.mxu0 %v1278
    %2270 = vmatpush.bf16.msra.mxu0 %v1269
    %2271 = vmatpush.bf16.msra.mxu0 %v1260
    %2272 = vmatpush.bf16.msra.mxu0 %v1251
    %2273 = vmatpush.bf16.msra.mxu0 %v1242
    %2274 = vmatpush.bf16.msra.mxu0 %v1233
    %2275 = vmatmul.bf16.gmra.mxu0 %v302
    %v2276 = vpop.f32.mrf.mxu0
    %v2277 = vadd.f32 0.0, %v2276
    %v2278 = vpop.f32.mrf.mxu0
    %v2279 = vadd.f32 0.0, %v2278
    %2280 = vmatmul.bf16.gmra.mxu0 %v305
    %v2281 = vpop.f32.mrf.mxu0
    %v2282 = vadd.f32 0.0, %v2281
    %v2283 = vpop.f32.mrf.mxu0
    %v2284 = vadd.f32 0.0, %v2283
    %2285 = vmatmul.bf16.gmra.mxu0 %v308
    %v2286 = vpop.f32.mrf.mxu0
    %v2287 = vadd.f32 0.0, %v2286
    %v2288 = vpop.f32.mrf.mxu0
    %v2289 = vadd.f32 0.0, %v2288
    %2290 = vmatmul.bf16.gmra.mxu0 %v311
    %v2291 = vpop.f32.mrf.mxu0
    %v2292 = vadd.f32 0.0, %v2291
    %v2293 = vpop.f32.mrf.mxu0
    %v2294 = vadd.f32 0.0, %v2293
    %2295 = vdwg.mxu0
    %2296 = vmatpush.bf16.msra.mxu0 %v1368
    %2297 = vmatpush.bf16.msra.mxu0 %v1359
    %2298 = vmatpush.bf16.msra.mxu0 %v1350
    %2299 = vmatpush.bf16.msra.mxu0 %v1341
    %2300 = vmatpush.bf16.msra.mxu0 %v1332
    %2301 = vmatpush.bf16.msra.mxu0 %v1323
    %2302 = vmatpush.bf16.msra.mxu0 %v1314
    %2303 = vmatpush.bf16.msra.mxu0 %v1305
    %2304 = vmatmul.bf16.gmra.mxu0 %v303
    %v2305 = vpop.f32.mrf.mxu0
    %v2306 = vadd.f32 %v2277, %v2305
    %v2307 = vpop.f32.mrf.mxu0
    %v2308 = vadd.f32 %v2279, %v2307
    %2309 = vmatmul.bf16.gmra.mxu0 %v306
    %v2310 = vpop.f32.mrf.mxu0
    %v2311 = vadd.f32 %v2282, %v2310
    %v2312 = vpop.f32.mrf.mxu0
    %v2313 = vadd.f32 %v2284, %v2312
    %2314 = vmatmul.bf16.gmra.mxu0 %v309
    %v2315 = vpop.f32.mrf.mxu0
    %v2316 = vadd.f32 %v2287, %v2315
    %v2317 = vpop.f32.mrf.mxu0
    %v2318 = vadd.f32 %v2289, %v2317
    %2319 = vmatmul.bf16.gmra.mxu0 %v312
    %v2320 = vpop.f32.mrf.mxu0
    %v2321 = vadd.f32 %v2292, %v2320
    %v2322 = vpop.f32.mrf.mxu0
    %v2323 = vadd.f32 %v2294, %v2322
    %2324 = vdwg.mxu0
    %2325 = vmatpush.bf16.msra.mxu0 %v1440
    %2326 = vmatpush.bf16.msra.mxu0 %v1431
    %2327 = vmatpush.bf16.msra.mxu0 %v1422
    %2328 = vmatpush.bf16.msra.mxu0 %v1413
    %2329 = vmatpush.bf16.msra.mxu0 %v1404
    %2330 = vmatpush.bf16.msra.mxu0 %v1395
    %2331 = vmatpush.bf16.msra.mxu0 %v1386
    %2332 = vmatpush.bf16.msra.mxu0 %v1377
    %2333 = vmatmul.bf16.gmra.mxu0 %v304
    %v2334 = vpop.f32.mrf.mxu0
    %v2335 = vadd.f32 %v2306, %v2334
    %v2336 = vpop.f32.mrf.mxu0
    %v2337 = vadd.f32 %v2308, %v2336
    %2338 = vmatmul.bf16.gmra.mxu0 %v307
    %v2339 = vpop.f32.mrf.mxu0
    %v2340 = vadd.f32 %v2311, %v2339
    %v2341 = vpop.f32.mrf.mxu0
    %v2342 = vadd.f32 %v2313, %v2341
    %2343 = vmatmul.bf16.gmra.mxu0 %v310
    %v2344 = vpop.f32.mrf.mxu0
    %v2345 = vadd.f32 %v2316, %v2344
    %v2346 = vpop.f32.mrf.mxu0
    %v2347 = vadd.f32 %v2318, %v2346
    %2348 = vmatmul.bf16.gmra.mxu0 %v313
    %v2349 = vpop.f32.mrf.mxu0
    %v2350 = vadd.f32 %v2321, %v2349
    %v2351 = vpop.f32.mrf.mxu0
    %v2352 = vadd.f32 %v2323, %v2351
    %2353 = vdwg.mxu0
    %2354 = vmatpush.bf16.msra.mxu0 %v1297
    %2355 = vmatpush.bf16.msra.mxu0 %v1288
    %2356 = vmatpush.bf16.msra.mxu0 %v1279
    %2357 = vmatpush.bf16.msra.mxu0 %v1270
    %2358 = vmatpush.bf16.msra.mxu0 %v1261
    %2359 = vmatpush.bf16.msra.mxu0 %v1252
    %2360 = vmatpush.bf16.msra.mxu0 %v1243
    %2361 = vmatpush.bf16.msra.mxu0 %v1234
    %2362 = vmatmul.bf16.gmra.mxu0 %v302
    %v2363 = vpop.f32.mrf.mxu0
    %v2364 = vadd.f32 0.0, %v2363
    %v2365 = vpop.f32.mrf.mxu0
    %v2366 = vadd.f32 0.0, %v2365
    %2367 = vmatmul.bf16.gmra.mxu0 %v305
    %v2368 = vpop.f32.mrf.mxu0
    %v2369 = vadd.f32 0.0, %v2368
    %v2370 = vpop.f32.mrf.mxu0
    %v2371 = vadd.f32 0.0, %v2370
    %2372 = vmatmul.bf16.gmra.mxu0 %v308
    %v2373 = vpop.f32.mrf.mxu0
    %v2374 = vadd.f32 0.0, %v2373
    %v2375 = vpop.f32.mrf.mxu0
    %v2376 = vadd.f32 0.0, %v2375
    %2377 = vmatmul.bf16.gmra.mxu0 %v311
    %v2378 = vpop.f32.mrf.mxu0
    %v2379 = vadd.f32 0.0, %v2378
    %v2380 = vpop.f32.mrf.mxu0
    %v2381 = vadd.f32 0.0, %v2380
    %2382 = vdwg.mxu0
    %2383 = vmatpush.bf16.msra.mxu0 %v1369
    %2384 = vmatpush.bf16.msra.mxu0 %v1360
    %2385 = vmatpush.bf16.msra.mxu0 %v1351
    %2386 = vmatpush.bf16.msra.mxu0 %v1342
    %2387 = vmatpush.bf16.msra.mxu0 %v1333
    %2388 = vmatpush.bf16.msra.mxu0 %v1324
    %2389 = vmatpush.bf16.msra.mxu0 %v1315
    %2390 = vmatpush.bf16.msra.mxu0 %v1306
    %2391 = vmatmul.bf16.gmra.mxu0 %v303
    %v2392 = vpop.f32.mrf.mxu0
    %v2393 = vadd.f32 %v2364, %v2392
    %v2394 = vpop.f32.mrf.mxu0
    %v2395 = vadd.f32 %v2366, %v2394
    %2396 = vmatmul.bf16.gmra.mxu0 %v306
    %v2397 = vpop.f32.mrf.mxu0
    %v2398 = vadd.f32 %v2369, %v2397
    %v2399 = vpop.f32.mrf.mxu0
    %v2400 = vadd.f32 %v2371, %v2399
    %2401 = vmatmul.bf16.gmra.mxu0 %v309
    %v2402 = vpop.f32.mrf.mxu0
    %v2403 = vadd.f32 %v2374, %v2402
    %v2404 = vpop.f32.mrf.mxu0
    %v2405 = vadd.f32 %v2376, %v2404
    %2406 = vmatmul.bf16.gmra.mxu0 %v312
    %v2407 = vpop.f32.mrf.mxu0
    %v2408 = vadd.f32 %v2379, %v2407
    %v2409 = vpop.f32.mrf.mxu0
    %v2410 = vadd.f32 %v2381, %v2409
    %2411 = vdwg.mxu0
    %2412 = vmatpush.bf16.msra.mxu0 %v1441
    %2413 = vmatpush.bf16.msra.mxu0 %v1432
    %2414 = vmatpush.bf16.msra.mxu0 %v1423
    %2415 = vmatpush.bf16.msra.mxu0 %v1414
    %2416 = vmatpush.bf16.msra.mxu0 %v1405
    %2417 = vmatpush.bf16.msra.mxu0 %v1396
    %2418 = vmatpush.bf16.msra.mxu0 %v1387
    %2419 = vmatpush.bf16.msra.mxu0 %v1378
    %2420 = vmatmul.bf16.gmra.mxu0 %v304
    %v2421 = vpop.f32.mrf.mxu0
    %v2422 = vadd.f32 %v2393, %v2421
    %v2423 = vpop.f32.mrf.mxu0
    %v2424 = vadd.f32 %v2395, %v2423
    %2425 = vmatmul.bf16.gmra.mxu0 %v307
    %v2426 = vpop.f32.mrf.mxu0
    %v2427 = vadd.f32 %v2398, %v2426
    %v2428 = vpop.f32.mrf.mxu0
    %v2429 = vadd.f32 %v2400, %v2428
    %2430 = vmatmul.bf16.gmra.mxu0 %v310
    %v2431 = vpop.f32.mrf.mxu0
    %v2432 = vadd.f32 %v2403, %v2431
    %v2433 = vpop.f32.mrf.mxu0
    %v2434 = vadd.f32 %v2405, %v2433
    %2435 = vmatmul.bf16.gmra.mxu0 %v313
    %v2436 = vpop.f32.mrf.mxu0
    %v2437 = vadd.f32 %v2408, %v2436
    %v2438 = vpop.f32.mrf.mxu0
    %v2439 = vadd.f32 %v2410, %v2438
    %2440 = vdwg.mxu0
    %v2441 = vrot.slane %v2248, 1
    %v2442 = vrot.slane %v2335, 1
    %v2443 = vrot.slane %v2422, 1
    %v2444 = vrot.slane %v2250, 1
    %v2445 = vrot.slane %v2337, 1
    %v2446 = vrot.slane %v2424, 1
    %v2447 = vrot.slane %v2253, 1
    %v2448 = vrot.slane %v2340, 1
    %v2449 = vrot.slane %v2427, 1
    %v2450 = vrot.slane %v2255, 1
    %v2451 = vrot.slane %v2342, 1
    %v2452 = vrot.slane %v2429, 1
    %v2453 = vrot.slane %v2258, 1
    %v2454 = vrot.slane %v2345, 1
    %v2455 = vrot.slane %v2432, 1
    %v2456 = vrot.slane %v2260, 1
    %v2457 = vrot.slane %v2347, 1
    %v2458 = vrot.slane %v2434, 1
    %v2459 = vrot.slane %v2263, 1
    %v2460 = vrot.slane %v2350, 1
    %v2461 = vrot.slane %v2437, 1
    %v2462 = vrot.slane %v2265, 1
    %v2463 = vrot.slane %v2352, 1
    %v2464 = vrot.slane %v2439, 1
    %v2465 = vlaneseq
    %v2466 = vshrl.u32 %v2465, 7
    %vm2467 = vcmp.lt.s32.totalorder %v2466, 7
    %v2468 = vsel %vm2467, %v2459, %v2462
    %v2469 = vsel %vm2467, %v2460, %v2463
    %v2470 = vsel %vm2467, %v2461, %v2464
    %v2471 = vsel %vm2467, %v2456, %v2459
    %v2472 = vsel %vm2467, %v2457, %v2460
    %v2473 = vsel %vm2467, %v2458, %v2461
    %v2474 = vsel %vm2467, %v2453, %v2456
    %v2475 = vsel %vm2467, %v2454, %v2457
    %v2476 = vsel %vm2467, %v2455, %v2458
    %v2477 = vsel %vm2467, %v2450, %v2453
    %v2478 = vsel %vm2467, %v2451, %v2454
    %v2479 = vsel %vm2467, %v2452, %v2455
    %v2480 = vsel %vm2467, %v2447, %v2450
    %v2481 = vsel %vm2467, %v2448, %v2451
    %v2482 = vsel %vm2467, %v2449, %v2452
    %v2483 = vsel %vm2467, %v2444, %v2447
    %v2484 = vsel %vm2467, %v2445, %v2448
    %v2485 = vsel %vm2467, %v2446, %v2449
    %v2486 = vsel %vm2467, %v2441, %v2444
    %v2487 = vsel %vm2467, %v2442, %v2445
    %v2488 = vsel %vm2467, %v2443, %v2446
    %v2489 = vsel %vm2467, %v2462, %v2441
    %v2490 = vsel %vm2467, %v2463, %v2442
    %v2491 = vsel %vm2467, %v2464, %v2443
    %v2492 = vmax.f32 %v1726, 0.0
    %v2493 = vmax.f32 %v1813, 0.0
    %v2494 = vmax.f32 %v1900, 0.0
    %v2495 = vmax.f32 %v1728, 0.0
    %v2496 = vmax.f32 %v1815, 0.0
    %v2497 = vmax.f32 %v1902, 0.0
    %v2498 = vmax.f32 %v1731, 0.0
    %v2499 = vmax.f32 %v1818, 0.0
    %v2500 = vmax.f32 %v1905, 0.0
    %v2501 = vmax.f32 %v1733, 0.0
    %v2502 = vmax.f32 %v1820, 0.0
    %v2503 = vmax.f32 %v1907, 0.0
    %v2504 = vmax.f32 %v1736, 0.0
    %v2505 = vmax.f32 %v1823, 0.0
    %v2506 = vmax.f32 %v1910, 0.0
    %v2507 = vmax.f32 %v1738, 0.0
    %v2508 = vmax.f32 %v1825, 0.0
    %v2509 = vmax.f32 %v1912, 0.0
    %v2510 = vmax.f32 %v1741, 0.0
    %v2511 = vmax.f32 %v1828, 0.0
    %v2512 = vmax.f32 %v1915, 0.0
    %v2513 = vmax.f32 %v1743, 0.0
    %v2514 = vmax.f32 %v1830, 0.0
    %v2515 = vmax.f32 %v1917, 0.0
    %v2516 = vrot.slane %v2492, 4
    %v2517 = vmax.f32 %v2492, %v2516
    %v2518 = vrot.slane %v2517, 2
    %v2519 = vmax.f32 %v2517, %v2518
    %v2520 = vrot.slane %v2519, 1
    %v2521 = vmax.f32 %v2519, %v2520
    %v2522 = vrot.slane %v2493, 4
    %v2523 = vmax.f32 %v2493, %v2522
    %v2524 = vrot.slane %v2523, 2
    %v2525 = vmax.f32 %v2523, %v2524
    %v2526 = vrot.slane %v2525, 1
    %v2527 = vmax.f32 %v2525, %v2526
    %v2528 = vrot.slane %v2494, 4
    %v2529 = vmax.f32 %v2494, %v2528
    %v2530 = vrot.slane %v2529, 2
    %v2531 = vmax.f32 %v2529, %v2530
    %v2532 = vrot.slane %v2531, 1
    %v2533 = vmax.f32 %v2531, %v2532
    %v2534 = vrot.slane %v2495, 4
    %v2535 = vmax.f32 %v2495, %v2534
    %v2536 = vrot.slane %v2535, 2
    %v2537 = vmax.f32 %v2535, %v2536
    %v2538 = vrot.slane %v2537, 1
    %v2539 = vmax.f32 %v2537, %v2538
    %v2540 = vrot.slane %v2496, 4
    %v2541 = vmax.f32 %v2496, %v2540
    %v2542 = vrot.slane %v2541, 2
    %v2543 = vmax.f32 %v2541, %v2542
    %v2544 = vrot.slane %v2543, 1
    %v2545 = vmax.f32 %v2543, %v2544
    %v2546 = vrot.slane %v2497, 4
    %v2547 = vmax.f32 %v2497, %v2546
    %v2548 = vrot.slane %v2547, 2
    %v2549 = vmax.f32 %v2547, %v2548
    %v2550 = vrot.slane %v2549, 1
    %v2551 = vmax.f32 %v2549, %v2550
    %v2552 = vrot.slane %v2498, 4
    %v2553 = vmax.f32 %v2498, %v2552
    %v2554 = vrot.slane %v2553, 2
    %v2555 = vmax.f32 %v2553, %v2554
    %v2556 = vrot.slane %v2555, 1
    %v2557 = vmax.f32 %v2555, %v2556
    %v2558 = vrot.slane %v2499, 4
    %v2559 = vmax.f32 %v2499, %v2558
    %v2560 = vrot.slane %v2559, 2
    %v2561 = vmax.f32 %v2559, %v2560
    %v2562 = vrot.slane %v2561, 1
    %v2563 = vmax.f32 %v2561, %v2562
    %v2564 = vrot.slane %v2500, 4
    %v2565 = vmax.f32 %v2500, %v2564
    %v2566 = vrot.slane %v2565, 2
    %v2567 = vmax.f32 %v2565, %v2566
    %v2568 = vrot.slane %v2567, 1
    %v2569 = vmax.f32 %v2567, %v2568
    %v2570 = vrot.slane %v2501, 4
    %v2571 = vmax.f32 %v2501, %v2570
    %v2572 = vrot.slane %v2571, 2
    %v2573 = vmax.f32 %v2571, %v2572
    %v2574 = vrot.slane %v2573, 1
    %v2575 = vmax.f32 %v2573, %v2574
    %v2576 = vrot.slane %v2502, 4
    %v2577 = vmax.f32 %v2502, %v2576
    %v2578 = vrot.slane %v2577, 2
    %v2579 = vmax.f32 %v2577, %v2578
    %v2580 = vrot.slane %v2579, 1
    %v2581 = vmax.f32 %v2579, %v2580
    %v2582 = vrot.slane %v2503, 4
    %v2583 = vmax.f32 %v2503, %v2582
    %v2584 = vrot.slane %v2583, 2
    %v2585 = vmax.f32 %v2583, %v2584
    %v2586 = vrot.slane %v2585, 1
    %v2587 = vmax.f32 %v2585, %v2586
    %v2588 = vrot.slane %v2504, 4
    %v2589 = vmax.f32 %v2504, %v2588
    %v2590 = vrot.slane %v2589, 2
    %v2591 = vmax.f32 %v2589, %v2590
    %v2592 = vrot.slane %v2591, 1
    %v2593 = vmax.f32 %v2591, %v2592
    %v2594 = vrot.slane %v2505, 4
    %v2595 = vmax.f32 %v2505, %v2594
    %v2596 = vrot.slane %v2595, 2
    %v2597 = vmax.f32 %v2595, %v2596
    %v2598 = vrot.slane %v2597, 1
    %v2599 = vmax.f32 %v2597, %v2598
    %v2600 = vrot.slane %v2506, 4
    %v2601 = vmax.f32 %v2506, %v2600
    %v2602 = vrot.slane %v2601, 2
    %v2603 = vmax.f32 %v2601, %v2602
    %v2604 = vrot.slane %v2603, 1
    %v2605 = vmax.f32 %v2603, %v2604
    %v2606 = vrot.slane %v2507, 4
    %v2607 = vmax.f32 %v2507, %v2606
    %v2608 = vrot.slane %v2607, 2
    %v2609 = vmax.f32 %v2607, %v2608
    %v2610 = vrot.slane %v2609, 1
    %v2611 = vmax.f32 %v2609, %v2610
    %v2612 = vrot.slane %v2508, 4
    %v2613 = vmax.f32 %v2508, %v2612
    %v2614 = vrot.slane %v2613, 2
    %v2615 = vmax.f32 %v2613, %v2614
    %v2616 = vrot.slane %v2615, 1
    %v2617 = vmax.f32 %v2615, %v2616
    %v2618 = vrot.slane %v2509, 4
    %v2619 = vmax.f32 %v2509, %v2618
    %v2620 = vrot.slane %v2619, 2
    %v2621 = vmax.f32 %v2619, %v2620
    %v2622 = vrot.slane %v2621, 1
    %v2623 = vmax.f32 %v2621, %v2622
    %v2624 = vrot.slane %v2510, 4
    %v2625 = vmax.f32 %v2510, %v2624
    %v2626 = vrot.slane %v2625, 2
    %v2627 = vmax.f32 %v2625, %v2626
    %v2628 = vrot.slane %v2627, 1
    %v2629 = vmax.f32 %v2627, %v2628
    %v2630 = vrot.slane %v2511, 4
    %v2631 = vmax.f32 %v2511, %v2630
    %v2632 = vrot.slane %v2631, 2
    %v2633 = vmax.f32 %v2631, %v2632
    %v2634 = vrot.slane %v2633, 1
    %v2635 = vmax.f32 %v2633, %v2634
    %v2636 = vrot.slane %v2512, 4
    %v2637 = vmax.f32 %v2512, %v2636
    %v2638 = vrot.slane %v2637, 2
    %v2639 = vmax.f32 %v2637, %v2638
    %v2640 = vrot.slane %v2639, 1
    %v2641 = vmax.f32 %v2639, %v2640
    %v2642 = vrot.slane %v2513, 4
    %v2643 = vmax.f32 %v2513, %v2642
    %v2644 = vrot.slane %v2643, 2
    %v2645 = vmax.f32 %v2643, %v2644
    %v2646 = vrot.slane %v2645, 1
    %v2647 = vmax.f32 %v2645, %v2646
    %v2648 = vrot.slane %v2514, 4
    %v2649 = vmax.f32 %v2514, %v2648
    %v2650 = vrot.slane %v2649, 2
    %v2651 = vmax.f32 %v2649, %v2650
    %v2652 = vrot.slane %v2651, 1
    %v2653 = vmax.f32 %v2651, %v2652
    %v2654 = vrot.slane %v2515, 4
    %v2655 = vmax.f32 %v2515, %v2654
    %v2656 = vrot.slane %v2655, 2
    %v2657 = vmax.f32 %v2655, %v2656
    %v2658 = vrot.slane %v2657, 1
    %v2659 = vmax.f32 %v2657, %v2658
    %v2660 = vadd.f32 %v1987, %v2486
    %v2661 = vadd.f32 %v2074, %v2487
    %v2662 = vadd.f32 %v2161, %v2488
    %v2663 = vadd.f32 %v1989, %v2483
    %v2664 = vadd.f32 %v2076, %v2484
    %v2665 = vadd.f32 %v2163, %v2485
    %v2666 = vadd.f32 %v1992, %v2480
    %v2667 = vadd.f32 %v2079, %v2481
    %v2668 = vadd.f32 %v2166, %v2482
    %v2669 = vadd.f32 %v1994, %v2477
    %v2670 = vadd.f32 %v2081, %v2478
    %v2671 = vadd.f32 %v2168, %v2479
    %v2672 = vadd.f32 %v1997, %v2474
    %v2673 = vadd.f32 %v2084, %v2475
    %v2674 = vadd.f32 %v2171, %v2476
    %v2675 = vadd.f32 %v1999, %v2471
    %v2676 = vadd.f32 %v2086, %v2472
    %v2677 = vadd.f32 %v2173, %v2473
    %v2678 = vadd.f32 %v2002, %v2468
    %v2679 = vadd.f32 %v2089, %v2469
    %v2680 = vadd.f32 %v2176, %v2470
    %v2681 = vadd.f32 %v2004, %v2489
    %v2682 = vadd.f32 %v2091, %v2490
    %v2683 = vadd.f32 %v2178, %v2491
    %v2684 = vmax.f32 %v2660, 0.0
    %v2685 = vmax.f32 %v2661, 0.0
    %v2686 = vmax.f32 %v2662, 0.0
    %v2687 = vmax.f32 %v2663, 0.0
    %v2688 = vmax.f32 %v2664, 0.0
    %v2689 = vmax.f32 %v2665, 0.0
    %v2690 = vmax.f32 %v2666, 0.0
    %v2691 = vmax.f32 %v2667, 0.0
    %v2692 = vmax.f32 %v2668, 0.0
    %v2693 = vmax.f32 %v2669, 0.0
    %v2694 = vmax.f32 %v2670, 0.0
    %v2695 = vmax.f32 %v2671, 0.0
    %v2696 = vmax.f32 %v2672, 0.0
    %v2697 = vmax.f32 %v2673, 0.0
    %v2698 = vmax.f32 %v2674, 0.0
    %v2699 = vmax.f32 %v2675, 0.0
    %v2700 = vmax.f32 %v2676, 0.0
    %v2701 = vmax.f32 %v2677, 0.0
    %v2702 = vmax.f32 %v2678, 0.0
    %v2703 = vmax.f32 %v2679, 0.0
    %v2704 = vmax.f32 %v2680, 0.0
    %v2705 = vmax.f32 %v2681, 0.0
    %v2706 = vmax.f32 %v2682, 0.0
    %v2707 = vmax.f32 %v2683, 0.0
    %v2708 = vsel %vm2467, 1, 0
    %vm2709 = vcmp.eq.s32.totalorder %v2708, 1
    %v2710 = vsel %vm2709, %v2684, 0.0
    %v2711 = vsel %vm2709, %v2685, 0.0
    %v2712 = vsel %vm2709, %v2686, 0.0
    %v2713 = vsel %vm2709, %v2687, 0.0
    %v2714 = vsel %vm2709, %v2688, 0.0
    %v2715 = vsel %vm2709, %v2689, 0.0
    %v2716 = vsel %vm2709, %v2690, 0.0
    %v2717 = vsel %vm2709, %v2691, 0.0
    %v2718 = vsel %vm2709, %v2692, 0.0
    %v2719 = vsel %vm2709, %v2693, 0.0
    %v2720 = vsel %vm2709, %v2694, 0.0
    %v2721 = vsel %vm2709, %v2695, 0.0
    %v2722 = vsel %vm2709, %v2696, 0.0
    %v2723 = vsel %vm2709, %v2697, 0.0
    %v2724 = vsel %vm2709, %v2698, 0.0
    %v2725 = vsel %vm2709, %v2699, 0.0
    %v2726 = vsel %vm2709, %v2700, 0.0
    %v2727 = vsel %vm2709, %v2701, 0.0
    %v2728 = vsel %vm2709, %v2702, 0.0
    %v2729 = vsel %vm2709, %v2703, 0.0
    %v2730 = vsel %vm2709, %v2704, 0.0
    %v2731 = vsel %vm2709, %v2705, 0.0
    %v2732 = vsel %vm2709, %v2706, 0.0
    %v2733 = vsel %vm2709, %v2707, 0.0
    %v2734 = vrot.slane %v2710, 4
    %v2735 = vmax.f32 %v2710, %v2734
    %v2736 = vrot.slane %v2735, 2
    %v2737 = vmax.f32 %v2735, %v2736
    %v2738 = vrot.slane %v2737, 1
    %v2739 = vmax.f32 %v2737, %v2738
    %v2740 = vrot.slane %v2711, 4
    %v2741 = vmax.f32 %v2711, %v2740
    %v2742 = vrot.slane %v2741, 2
    %v2743 = vmax.f32 %v2741, %v2742
    %v2744 = vrot.slane %v2743, 1
    %v2745 = vmax.f32 %v2743, %v2744
    %v2746 = vrot.slane %v2712, 4
    %v2747 = vmax.f32 %v2712, %v2746
    %v2748 = vrot.slane %v2747, 2
    %v2749 = vmax.f32 %v2747, %v2748
    %v2750 = vrot.slane %v2749, 1
    %v2751 = vmax.f32 %v2749, %v2750
    %v2752 = vrot.slane %v2713, 4
    %v2753 = vmax.f32 %v2713, %v2752
    %v2754 = vrot.slane %v2753, 2
    %v2755 = vmax.f32 %v2753, %v2754
    %v2756 = vrot.slane %v2755, 1
    %v2757 = vmax.f32 %v2755, %v2756
    %v2758 = vrot.slane %v2714, 4
    %v2759 = vmax.f32 %v2714, %v2758
    %v2760 = vrot.slane %v2759, 2
    %v2761 = vmax.f32 %v2759, %v2760
    %v2762 = vrot.slane %v2761, 1
    %v2763 = vmax.f32 %v2761, %v2762
    %v2764 = vrot.slane %v2715, 4
    %v2765 = vmax.f32 %v2715, %v2764
    %v2766 = vrot.slane %v2765, 2
    %v2767 = vmax.f32 %v2765, %v2766
    %v2768 = vrot.slane %v2767, 1
    %v2769 = vmax.f32 %v2767, %v2768
    %v2770 = vrot.slane %v2716, 4
    %v2771 = vmax.f32 %v2716, %v2770
    %v2772 = vrot.slane %v2771, 2
    %v2773 = vmax.f32 %v2771, %v2772
    %v2774 = vrot.slane %v2773, 1
    %v2775 = vmax.f32 %v2773, %v2774
    %v2776 = vrot.slane %v2717, 4
    %v2777 = vmax.f32 %v2717, %v2776
    %v2778 = vrot.slane %v2777, 2
    %v2779 = vmax.f32 %v2777, %v2778
    %v2780 = vrot.slane %v2779, 1
    %v2781 = vmax.f32 %v2779, %v2780
    %v2782 = vrot.slane %v2718, 4
    %v2783 = vmax.f32 %v2718, %v2782
    %v2784 = vrot.slane %v2783, 2
    %v2785 = vmax.f32 %v2783, %v2784
    %v2786 = vrot.slane %v2785, 1
    %v2787 = vmax.f32 %v2785, %v2786
    %v2788 = vrot.slane %v2719, 4
    %v2789 = vmax.f32 %v2719, %v2788
    %v2790 = vrot.slane %v2789, 2
    %v2791 = vmax.f32 %v2789, %v2790
    %v2792 = vrot.slane %v2791, 1
    %v2793 = vmax.f32 %v2791, %v2792
    %v2794 = vrot.slane %v2720, 4
    %v2795 = vmax.f32 %v2720, %v2794
    %v2796 = vrot.slane %v2795, 2
    %v2797 = vmax.f32 %v2795, %v2796
    %v2798 = vrot.slane %v2797, 1
    %v2799 = vmax.f32 %v2797, %v2798
    %v2800 = vrot.slane %v2721, 4
    %v2801 = vmax.f32 %v2721, %v2800
    %v2802 = vrot.slane %v2801, 2
    %v2803 = vmax.f32 %v2801, %v2802
    %v2804 = vrot.slane %v2803, 1
    %v2805 = vmax.f32 %v2803, %v2804
    %v2806 = vrot.slane %v2722, 4
    %v2807 = vmax.f32 %v2722, %v2806
    %v2808 = vrot.slane %v2807, 2
    %v2809 = vmax.f32 %v2807, %v2808
    %v2810 = vrot.slane %v2809, 1
    %v2811 = vmax.f32 %v2809, %v2810
    %v2812 = vrot.slane %v2723, 4
    %v2813 = vmax.f32 %v2723, %v2812
    %v2814 = vrot.slane %v2813, 2
    %v2815 = vmax.f32 %v2813, %v2814
    %v2816 = vrot.slane %v2815, 1
    %v2817 = vmax.f32 %v2815, %v2816
    %v2818 = vrot.slane %v2724, 4
    %v2819 = vmax.f32 %v2724, %v2818
    %v2820 = vrot.slane %v2819, 2
    %v2821 = vmax.f32 %v2819, %v2820
    %v2822 = vrot.slane %v2821, 1
    %v2823 = vmax.f32 %v2821, %v2822
    %v2824 = vrot.slane %v2725, 4
    %v2825 = vmax.f32 %v2725, %v2824
    %v2826 = vrot.slane %v2825, 2
    %v2827 = vmax.f32 %v2825, %v2826
    %v2828 = vrot.slane %v2827, 1
    %v2829 = vmax.f32 %v2827, %v2828
    %v2830 = vrot.slane %v2726, 4
    %v2831 = vmax.f32 %v2726, %v2830
    %v2832 = vrot.slane %v2831, 2
    %v2833 = vmax.f32 %v2831, %v2832
    %v2834 = vrot.slane %v2833, 1
    %v2835 = vmax.f32 %v2833, %v2834
    %v2836 = vrot.slane %v2727, 4
    %v2837 = vmax.f32 %v2727, %v2836
    %v2838 = vrot.slane %v2837, 2
    %v2839 = vmax.f32 %v2837, %v2838
    %v2840 = vrot.slane %v2839, 1
    %v2841 = vmax.f32 %v2839, %v2840
    %v2842 = vrot.slane %v2728, 4
    %v2843 = vmax.f32 %v2728, %v2842
    %v2844 = vrot.slane %v2843, 2
    %v2845 = vmax.f32 %v2843, %v2844
    %v2846 = vrot.slane %v2845, 1
    %v2847 = vmax.f32 %v2845, %v2846
    %v2848 = vrot.slane %v2729, 4
    %v2849 = vmax.f32 %v2729, %v2848
    %v2850 = vrot.slane %v2849, 2
    %v2851 = vmax.f32 %v2849, %v2850
    %v2852 = vrot.slane %v2851, 1
    %v2853 = vmax.f32 %v2851, %v2852
    %v2854 = vrot.slane %v2730, 4
    %v2855 = vmax.f32 %v2730, %v2854
    %v2856 = vrot.slane %v2855, 2
    %v2857 = vmax.f32 %v2855, %v2856
    %v2858 = vrot.slane %v2857, 1
    %v2859 = vmax.f32 %v2857, %v2858
    %v2860 = vrot.slane %v2731, 4
    %v2861 = vmax.f32 %v2731, %v2860
    %v2862 = vrot.slane %v2861, 2
    %v2863 = vmax.f32 %v2861, %v2862
    %v2864 = vrot.slane %v2863, 1
    %v2865 = vmax.f32 %v2863, %v2864
    %v2866 = vrot.slane %v2732, 4
    %v2867 = vmax.f32 %v2732, %v2866
    %v2868 = vrot.slane %v2867, 2
    %v2869 = vmax.f32 %v2867, %v2868
    %v2870 = vrot.slane %v2869, 1
    %v2871 = vmax.f32 %v2869, %v2870
    %v2872 = vrot.slane %v2733, 4
    %v2873 = vmax.f32 %v2733, %v2872
    %v2874 = vrot.slane %v2873, 2
    %v2875 = vmax.f32 %v2873, %v2874
    %v2876 = vrot.slane %v2875, 1
    %v2877 = vmax.f32 %v2875, %v2876
    %vm2902 = vcmask 1041409
    %v2903 = vsel %vm2902, %v2539, %v2521
    %vm2904 = vcmask 1042434
    %v2905 = vsel %vm2904, %v2557, %v2903
    %vm2906 = vcmask 1043459
    %v2907 = vsel %vm2906, %v2575, %v2905
    %vm2908 = vcmask 1044484
    %v2909 = vsel %vm2908, %v2593, %v2907
    %vm2910 = vcmask 1045509
    %v2911 = vsel %vm2910, %v2611, %v2909
    %vm2912 = vcmask 1046534
    %v2913 = vsel %vm2912, %v2629, %v2911
    %vm2914 = vcmask 1047559
    %v2915 = vsel %vm2914, %v2647, %v2913
    %v2916 = vsel %vm2902, %v2545, %v2527
    %v2917 = vsel %vm2904, %v2563, %v2916
    %v2918 = vsel %vm2906, %v2581, %v2917
    %v2919 = vsel %vm2908, %v2599, %v2918
    %v2920 = vsel %vm2910, %v2617, %v2919
    %v2921 = vsel %vm2912, %v2635, %v2920
    %v2922 = vsel %vm2914, %v2653, %v2921
    %v2923 = vsel %vm2902, %v2551, %v2533
    %v2924 = vsel %vm2904, %v2569, %v2923
    %v2925 = vsel %vm2906, %v2587, %v2924
    %v2926 = vsel %vm2908, %v2605, %v2925
    %v2927 = vsel %vm2910, %v2623, %v2926
    %v2928 = vsel %vm2912, %v2641, %v2927
    %v2929 = vsel %vm2914, %v2659, %v2928
    %v2957 = vsel %vm2902, %v2757, %v2739
    %v2958 = vsel %vm2904, %v2775, %v2957
    %v2959 = vsel %vm2906, %v2793, %v2958
    %v2960 = vsel %vm2908, %v2811, %v2959
    %v2961 = vsel %vm2910, %v2829, %v2960
    %v2962 = vsel %vm2912, %v2847, %v2961
    %v2963 = vsel %vm2914, %v2865, %v2962
    %v2964 = vsel %vm2902, %v2763, %v2745
    %v2965 = vsel %vm2904, %v2781, %v2964
    %v2966 = vsel %vm2906, %v2799, %v2965
    %v2967 = vsel %vm2908, %v2817, %v2966
    %v2968 = vsel %vm2910, %v2835, %v2967
    %v2969 = vsel %vm2912, %v2853, %v2968
    %v2970 = vsel %vm2914, %v2871, %v2969
    %v2971 = vsel %vm2902, %v2769, %v2751
    %v2972 = vsel %vm2904, %v2787, %v2971
    %v2973 = vsel %vm2906, %v2805, %v2972
    %v2974 = vsel %vm2908, %v2823, %v2973
    %v2975 = vsel %vm2910, %v2841, %v2974
    %v2976 = vsel %vm2912, %v2859, %v2975
    %v2977 = vsel %vm2914, %v2877, %v2976
    %v2981 = vpack.c.bf16 %v2915, %v2915
    %v2982 = vpack.c.bf16 %v2922, %v2922
    %v2983 = vpack.c.bf16 %v2929, %v2929
    %v2984 = vpack.c.bf16 %v2963, %v2963
    %v2985 = vpack.c.bf16 %v2970, %v2970
    %v2986 = vpack.c.bf16 %v2977, %v2977
    %v2987 = vld [vmem:[#allocation6] sm:$0xf]
    %v2988 = vld [vmem:[#allocation6 + $0x4] sm:$0xf]
    %v2989 = vld [vmem:[#allocation6 + $0x8] sm:$0xf]
    %v2990 = vld [vmem:[#allocation6 + $0xc] sm:$0xf]
    %v2991 = vld [vmem:[#allocation6 + $0x10] sm:$0xf]
    %v2992 = vld [vmem:[#allocation6 + $0x14] sm:$0xf]
    %v2993 = vld [vmem:[#allocation6 + $0x18] sm:$0xf]
    %v2994 = vld [vmem:[#allocation6 + $0x1c] sm:$0xf]
    %v2995 = vld [vmem:[#allocation6 + $0x20] sm:$0xf]
    %v2996 = vld [vmem:[#allocation6 + $0x24] sm:$0xf]
    %v2997 = vld [vmem:[#allocation6 + $0x28] sm:$0xf]
    %v2998 = vld [vmem:[#allocation6 + $0x2c] sm:$0xf]
    %v2999 = vld [vmem:[#allocation6 + $0x30] sm:$0xf]
    %v3000 = vld [vmem:[#allocation6 + $0x34] sm:$0xf]
    %v3001 = vld [vmem:[#allocation6 + $0x38] sm:$0xf]
    %v3002 = vld [vmem:[#allocation6 + $0x3c] sm:$0xf]
    %v3003 = vld [vmem:[#allocation6 + $0x40] sm:$0xf]
    %v3004 = vld [vmem:[#allocation6 + $0x44] sm:$0xf]
    %v3005 = vld [vmem:[#allocation6 + $0x48] sm:$0xf]
    %v3006 = vld [vmem:[#allocation6 + $0x4c] sm:$0xf]
    %v3007 = vld [vmem:[#allocation6 + $0x50] sm:$0xf]
    %v3008 = vld [vmem:[#allocation6 + $0x54] sm:$0xf]
    %v3009 = vld [vmem:[#allocation6 + $0x58] sm:$0xf]
    %v3010 = vld [vmem:[#allocation6 + $0x5c] sm:$0xf]
    %v3011 = vld [vmem:[#allocation6 + $0x60] sm:$0xf]
    %v3012 = vld [vmem:[#allocation6 + $0x64] sm:$0xf]
    %v3013 = vld [vmem:[#allocation6 + $0x68] sm:$0xf]
    %v3014 = vld [vmem:[#allocation6 + $0x6c] sm:$0xf]
    %v3015 = vld [vmem:[#allocation6 + $0x70] sm:$0xf]
    %v3016 = vld [vmem:[#allocation6 + $0x74] sm:$0xf]
    %v3017 = vld [vmem:[#allocation6 + $0x78] sm:$0xf]
    %v3018 = vld [vmem:[#allocation6 + $0x7c] sm:$0xf]
    %v3019 = vld [vmem:[#allocation6 + $0x80] sm:$0xf]
    %v3020 = vld [vmem:[#allocation6 + $0x84] sm:$0xf]
    %v3021 = vld [vmem:[#allocation6 + $0x88] sm:$0xf]
    %v3022 = vld [vmem:[#allocation6 + $0x8c] sm:$0xf]
    %v3023 = vld [vmem:[#allocation6 + $0x90] sm:$0xf]
    %v3024 = vld [vmem:[#allocation6 + $0x94] sm:$0xf]
    %v3025 = vld [vmem:[#allocation6 + $0x98] sm:$0xf]
    %v3026 = vld [vmem:[#allocation6 + $0x9c] sm:$0xf]
    %v3027 = vld [vmem:[#allocation6 + $0xa0] sm:$0xf]
    %v3028 = vld [vmem:[#allocation6 + $0xa4] sm:$0xf]
    %v3029 = vld [vmem:[#allocation6 + $0xa8] sm:$0xf]
    %v3030 = vld [vmem:[#allocation6 + $0xac] sm:$0xf]
    %v3031 = vld [vmem:[#allocation6 + $0xb0] sm:$0xf]
    %v3032 = vld [vmem:[#allocation6 + $0xb4] sm:$0xf]
    %v3033 = vld [vmem:[#allocation6 + $0xb8] sm:$0xf]
    %v3034 = vld [vmem:[#allocation6 + $0xbc] sm:$0xf]
    %v3035 = vld [vmem:[#allocation6 + $0xc0] sm:$0xf]
    %v3036 = vld [vmem:[#allocation6 + $0xc4] sm:$0xf]
    %v3037 = vld [vmem:[#allocation6 + $0xc8] sm:$0xf]
    %v3038 = vld [vmem:[#allocation6 + $0xcc] sm:$0xf]
    %v3039 = vld [vmem:[#allocation6 + $0xd0] sm:$0xf]
    %v3040 = vld [vmem:[#allocation6 + $0xd4] sm:$0xf]
    %v3041 = vld [vmem:[#allocation6 + $0xd8] sm:$0xf]
    %v3042 = vld [vmem:[#allocation6 + $0xdc] sm:$0xf]
    %v3043 = vld [vmem:[#allocation6 + $0xe0] sm:$0xf]
    %v3044 = vld [vmem:[#allocation6 + $0xe4] sm:$0xf]
    %v3045 = vld [vmem:[#allocation6 + $0xe8] sm:$0xf]
    %v3046 = vld [vmem:[#allocation6 + $0xec] sm:$0xf]
    %v3047 = vld [vmem:[#allocation6 + $0xf0] sm:$0xf]
    %v3048 = vld [vmem:[#allocation6 + $0xf4] sm:$0xf]
    %v3049 = vld [vmem:[#allocation6 + $0xf8] sm:$0xf]
    %v3050 = vld [vmem:[#allocation6 + $0xfc] sm:$0xf]
    %v3051 = vld [vmem:[#allocation6 + $0x100] sm:$0xf]
    %v3052 = vld [vmem:[#allocation6 + $0x104] sm:$0xf]
    %v3053 = vld [vmem:[#allocation6 + $0x108] sm:$0xf]
    %v3054 = vld [vmem:[#allocation6 + $0x10c] sm:$0xf]
    %v3055 = vld [vmem:[#allocation6 + $0x110] sm:$0xf]
    %v3056 = vld [vmem:[#allocation6 + $0x114] sm:$0xf]
    %v3057 = vld [vmem:[#allocation6 + $0x118] sm:$0xf]
    %v3058 = vld [vmem:[#allocation6 + $0x11c] sm:$0xf]
    %v3059 = vld [vmem:[#allocation6 + $0x120] sm:$0xf]
    %v3060 = vld [vmem:[#allocation6 + $0x124] sm:$0xf]
    %v3061 = vld [vmem:[#allocation6 + $0x128] sm:$0xf]
    %v3062 = vld [vmem:[#allocation6 + $0x12c] sm:$0xf]
    %v3063 = vld [vmem:[#allocation6 + $0x130] sm:$0xf]
    %v3064 = vld [vmem:[#allocation6 + $0x134] sm:$0xf]
    %v3065 = vld [vmem:[#allocation6 + $0x138] sm:$0xf]
    %v3066 = vld [vmem:[#allocation6 + $0x13c] sm:$0xf]
    %v3067 = vld [vmem:[#allocation6 + $0x140] sm:$0xf]
    %v3068 = vld [vmem:[#allocation6 + $0x144] sm:$0xf]
    %v3069 = vld [vmem:[#allocation6 + $0x148] sm:$0xf]
    %v3070 = vld [vmem:[#allocation6 + $0x14c] sm:$0xf]
    %v3071 = vld [vmem:[#allocation6 + $0x150] sm:$0xf]
    %v3072 = vld [vmem:[#allocation6 + $0x154] sm:$0xf]
    %v3073 = vld [vmem:[#allocation6 + $0x158] sm:$0xf]
    %v3074 = vld [vmem:[#allocation6 + $0x15c] sm:$0xf]
    %v3075 = vld [vmem:[#allocation6 + $0x160] sm:$0xf]
    %v3076 = vld [vmem:[#allocation6 + $0x164] sm:$0xf]
    %v3077 = vld [vmem:[#allocation6 + $0x168] sm:$0xf]
    %v3078 = vld [vmem:[#allocation6 + $0x16c] sm:$0xf]
    %v3079 = vld [vmem:[#allocation6 + $0x170] sm:$0xf]
    %v3080 = vld [vmem:[#allocation6 + $0x174] sm:$0xf]
    %v3081 = vld [vmem:[#allocation6 + $0x178] sm:$0xf]
    %v3082 = vld [vmem:[#allocation6 + $0x17c] sm:$0xf]
    %v3083 = vld [vmem:[%s4] sm:$0x1]
    %v3085 = vperm.slane %v3083, 0
    %v3183 = vunpack.c.l.b16 %v2987
    %v3184 = vunpack.c.l.b16 %v2988
    %v3185 = vunpack.c.l.b16 %v2989
    %v3186 = vunpack.c.l.b16 %v2990
    %v3187 = vunpack.c.l.b16 %v2991
    %v3188 = vunpack.c.l.b16 %v2992
    %v3189 = vunpack.c.l.b16 %v2993
    %v3190 = vunpack.c.l.b16 %v2994
    %v3191 = vunpack.c.l.b16 %v2995
    %v3192 = vunpack.c.l.b16 %v2996
    %v3193 = vunpack.c.l.b16 %v2997
    %v3194 = vunpack.c.l.b16 %v2998
    %v3195 = vunpack.c.l.b16 %v2999
    %v3196 = vunpack.c.l.b16 %v3000
    %v3197 = vunpack.c.l.b16 %v3001
    %v3198 = vunpack.c.l.b16 %v3002
    %v3199 = vunpack.c.l.b16 %v3003
    %v3200 = vunpack.c.l.b16 %v3004
    %v3201 = vunpack.c.l.b16 %v3005
    %v3202 = vunpack.c.l.b16 %v3006
    %v3203 = vunpack.c.l.b16 %v3007
    %v3204 = vunpack.c.l.b16 %v3008
    %v3205 = vunpack.c.l.b16 %v3009
    %v3206 = vunpack.c.l.b16 %v3010
    %v3207 = vunpack.c.l.b16 %v3011
    %v3208 = vunpack.c.l.b16 %v3012
    %v3209 = vunpack.c.l.b16 %v3013
    %v3210 = vunpack.c.l.b16 %v3014
    %v3211 = vunpack.c.l.b16 %v3015
    %v3212 = vunpack.c.l.b16 %v3016
    %v3213 = vunpack.c.l.b16 %v3017
    %v3214 = vunpack.c.l.b16 %v3018
    %v3215 = vunpack.c.l.b16 %v3019
    %v3216 = vunpack.c.l.b16 %v3020
    %v3217 = vunpack.c.l.b16 %v3021
    %v3218 = vunpack.c.l.b16 %v3022
    %v3219 = vunpack.c.l.b16 %v3023
    %v3220 = vunpack.c.l.b16 %v3024
    %v3221 = vunpack.c.l.b16 %v3025
    %v3222 = vunpack.c.l.b16 %v3026
    %v3223 = vunpack.c.l.b16 %v3027
    %v3224 = vunpack.c.l.b16 %v3028
    %v3225 = vunpack.c.l.b16 %v3029
    %v3226 = vunpack.c.l.b16 %v3030
    %v3227 = vunpack.c.l.b16 %v3031
    %v3228 = vunpack.c.l.b16 %v3032
    %v3229 = vunpack.c.l.b16 %v3033
    %v3230 = vunpack.c.l.b16 %v3034
    %v3231 = vunpack.c.l.b16 %v3035
    %v3232 = vunpack.c.l.b16 %v3036
    %v3233 = vunpack.c.l.b16 %v3037
    %v3234 = vunpack.c.l.b16 %v3038
    %v3235 = vunpack.c.l.b16 %v3039
    %v3236 = vunpack.c.l.b16 %v3040
    %v3237 = vunpack.c.l.b16 %v3041
    %v3238 = vunpack.c.l.b16 %v3042
    %v3239 = vunpack.c.l.b16 %v3043
    %v3240 = vunpack.c.l.b16 %v3044
    %v3241 = vunpack.c.l.b16 %v3045
    %v3242 = vunpack.c.l.b16 %v3046
    %v3243 = vunpack.c.l.b16 %v3047
    %v3244 = vunpack.c.l.b16 %v3048
    %v3245 = vunpack.c.l.b16 %v3049
    %v3246 = vunpack.c.l.b16 %v3050
    %v3247 = vunpack.c.l.b16 %v3051
    %v3248 = vunpack.c.l.b16 %v3052
    %v3249 = vunpack.c.l.b16 %v3053
    %v3250 = vunpack.c.l.b16 %v3054
    %v3251 = vunpack.c.l.b16 %v3055
    %v3252 = vunpack.c.l.b16 %v3056
    %v3253 = vunpack.c.l.b16 %v3057
    %v3254 = vunpack.c.l.b16 %v3058
    %v3255 = vunpack.c.l.b16 %v3059
    %v3256 = vunpack.c.l.b16 %v3060
    %v3257 = vunpack.c.l.b16 %v3061
    %v3258 = vunpack.c.l.b16 %v3062
    %v3259 = vunpack.c.l.b16 %v3063
    %v3260 = vunpack.c.l.b16 %v3064
    %v3261 = vunpack.c.l.b16 %v3065
    %v3262 = vunpack.c.l.b16 %v3066
    %v3263 = vunpack.c.l.b16 %v3067
    %v3264 = vunpack.c.l.b16 %v3068
    %v3265 = vunpack.c.l.b16 %v3069
    %v3266 = vunpack.c.l.b16 %v3070
    %v3267 = vunpack.c.l.b16 %v3071
    %v3268 = vunpack.c.l.b16 %v3072
    %v3269 = vunpack.c.l.b16 %v3073
    %v3270 = vunpack.c.l.b16 %v3074
    %v3271 = vunpack.c.l.b16 %v3075
    %v3272 = vunpack.c.l.b16 %v3076
    %v3273 = vunpack.c.l.b16 %v3077
    %v3274 = vunpack.c.l.b16 %v3078
    %v3275 = vunpack.c.l.b16 %v3079
    %v3276 = vunpack.c.l.b16 %v3080
    %v3277 = vunpack.c.l.b16 %v3081
    %v3278 = vunpack.c.l.b16 %v3082
    %v3279 = vpack.c.b16 %v3184, %v3183
    %v3280 = vpack.c.b16 %v3186, %v3185
    %v3281 = vpack.c.b16 %v3188, %v3187
    %v3282 = vpack.c.b16 %v3190, %v3189
    %v3283 = vpack.c.b16 %v3192, %v3191
    %v3284 = vpack.c.b16 %v3194, %v3193
    %v3285 = vpack.c.b16 %v3196, %v3195
    %v3286 = vpack.c.b16 %v3198, %v3197
    %v3287 = vpack.c.b16 %v3200, %v3199
    %v3288 = vpack.c.b16 %v3202, %v3201
    %v3289 = vpack.c.b16 %v3204, %v3203
    %v3290 = vpack.c.b16 %v3206, %v3205
    %v3291 = vpack.c.b16 %v3208, %v3207
    %v3292 = vpack.c.b16 %v3210, %v3209
    %v3293 = vpack.c.b16 %v3212, %v3211
    %v3294 = vpack.c.b16 %v3214, %v3213
    %v3295 = vpack.c.b16 %v3216, %v3215
    %v3296 = vpack.c.b16 %v3218, %v3217
    %v3297 = vpack.c.b16 %v3220, %v3219
    %v3298 = vpack.c.b16 %v3222, %v3221
    %v3299 = vpack.c.b16 %v3224, %v3223
    %v3300 = vpack.c.b16 %v3226, %v3225
    %v3301 = vpack.c.b16 %v3228, %v3227
    %v3302 = vpack.c.b16 %v3230, %v3229
    %v3303 = vpack.c.b16 %v3232, %v3231
    %v3304 = vpack.c.b16 %v3234, %v3233
    %v3305 = vpack.c.b16 %v3236, %v3235
    %v3306 = vpack.c.b16 %v3238, %v3237
    %v3307 = vpack.c.b16 %v3240, %v3239
    %v3308 = vpack.c.b16 %v3242, %v3241
    %v3309 = vpack.c.b16 %v3244, %v3243
    %v3310 = vpack.c.b16 %v3246, %v3245
    %v3311 = vpack.c.b16 %v3248, %v3247
    %v3312 = vpack.c.b16 %v3250, %v3249
    %v3313 = vpack.c.b16 %v3252, %v3251
    %v3314 = vpack.c.b16 %v3254, %v3253
    %v3315 = vpack.c.b16 %v3256, %v3255
    %v3316 = vpack.c.b16 %v3258, %v3257
    %v3317 = vpack.c.b16 %v3260, %v3259
    %v3318 = vpack.c.b16 %v3262, %v3261
    %v3319 = vpack.c.b16 %v3264, %v3263
    %v3320 = vpack.c.b16 %v3266, %v3265
    %v3321 = vpack.c.b16 %v3268, %v3267
    %v3322 = vpack.c.b16 %v3270, %v3269
    %v3323 = vpack.c.b16 %v3272, %v3271
    %v3324 = vpack.c.b16 %v3274, %v3273
    %v3325 = vpack.c.b16 %v3276, %v3275
    %v3326 = vpack.c.b16 %v3278, %v3277
    %3375 = vmatpush.bf16.msra.mxu0 %v3286
    %3376 = vmatpush.bf16.msra.mxu0 %v3285
    %3377 = vmatpush.bf16.msra.mxu0 %v3284
    %3378 = vmatpush.bf16.msra.mxu0 %v3283
    %3379 = vmatpush.bf16.msra.mxu0 %v3282
    %3380 = vmatpush.bf16.msra.mxu0 %v3281
    %3381 = vmatpush.bf16.msra.mxu0 %v3280
    %3382 = vmatpush.bf16.msra.mxu0 %v3279
    %3383 = vmatmul.bf16.gmra.mxu0 %v2981
    %v3384 = vpop.f32.mrf.mxu0
    %v3385 = vadd.f32 %v3085, %v3384
    %v3386 = vpop.f32.mrf.mxu0
    %3387 = vdwg.mxu0
    %3388 = vmatpush.bf16.msra.mxu0 %v3294
    %3389 = vmatpush.bf16.msra.mxu0 %v3293
    %3390 = vmatpush.bf16.msra.mxu0 %v3292
    %3391 = vmatpush.bf16.msra.mxu0 %v3291
    %3392 = vmatpush.bf16.msra.mxu0 %v3290
    %3393 = vmatpush.bf16.msra.mxu0 %v3289
    %3394 = vmatpush.bf16.msra.mxu0 %v3288
    %3395 = vmatpush.bf16.msra.mxu0 %v3287
    %3396 = vmatmul.bf16.gmra.mxu0 %v2982
    %v3397 = vpop.f32.mrf.mxu0
    %v3398 = vadd.f32 %v3385, %v3397
    %v3399 = vpop.f32.mrf.mxu0
    %3400 = vdwg.mxu0
    %3401 = vmatpush.bf16.msra.mxu0 %v3302
    %3402 = vmatpush.bf16.msra.mxu0 %v3301
    %3403 = vmatpush.bf16.msra.mxu0 %v3300
    %3404 = vmatpush.bf16.msra.mxu0 %v3299
    %3405 = vmatpush.bf16.msra.mxu0 %v3298
    %3406 = vmatpush.bf16.msra.mxu0 %v3297
    %3407 = vmatpush.bf16.msra.mxu0 %v3296
    %3408 = vmatpush.bf16.msra.mxu0 %v3295
    %3409 = vmatmul.bf16.gmra.mxu0 %v2983
    %v3410 = vpop.f32.mrf.mxu0
    %v3411 = vadd.f32 %v3398, %v3410
    %v3412 = vpop.f32.mrf.mxu0
    %3413 = vdwg.mxu0
    %3414 = vmatpush.bf16.msra.mxu0 %v3310
    %3415 = vmatpush.bf16.msra.mxu0 %v3309
    %3416 = vmatpush.bf16.msra.mxu0 %v3308
    %3417 = vmatpush.bf16.msra.mxu0 %v3307
    %3418 = vmatpush.bf16.msra.mxu0 %v3306
    %3419 = vmatpush.bf16.msra.mxu0 %v3305
    %3420 = vmatpush.bf16.msra.mxu0 %v3304
    %3421 = vmatpush.bf16.msra.mxu0 %v3303
    %3422 = vmatmul.bf16.gmra.mxu0 %v2984
    %v3423 = vpop.f32.mrf.mxu0
    %v3424 = vadd.f32 %v3411, %v3423
    %v3425 = vpop.f32.mrf.mxu0
    %3426 = vdwg.mxu0
    %3427 = vmatpush.bf16.msra.mxu0 %v3318
    %3428 = vmatpush.bf16.msra.mxu0 %v3317
    %3429 = vmatpush.bf16.msra.mxu0 %v3316
    %3430 = vmatpush.bf16.msra.mxu0 %v3315
    %3431 = vmatpush.bf16.msra.mxu0 %v3314
    %3432 = vmatpush.bf16.msra.mxu0 %v3313
    %3433 = vmatpush.bf16.msra.mxu0 %v3312
    %3434 = vmatpush.bf16.msra.mxu0 %v3311
    %3435 = vmatmul.bf16.gmra.mxu0 %v2985
    %v3436 = vpop.f32.mrf.mxu0
    %v3437 = vadd.f32 %v3424, %v3436
    %v3438 = vpop.f32.mrf.mxu0
    %3439 = vdwg.mxu0
    %3440 = vmatpush.bf16.msra.mxu0 %v3326
    %3441 = vmatpush.bf16.msra.mxu0 %v3325
    %3442 = vmatpush.bf16.msra.mxu0 %v3324
    %3443 = vmatpush.bf16.msra.mxu0 %v3323
    %3444 = vmatpush.bf16.msra.mxu0 %v3322
    %3445 = vmatpush.bf16.msra.mxu0 %v3321
    %3446 = vmatpush.bf16.msra.mxu0 %v3320
    %3447 = vmatpush.bf16.msra.mxu0 %v3319
    %3448 = vmatmul.bf16.gmra.mxu0 %v2986
    %v3449 = vpop.f32.mrf.mxu0
    %v3450 = vadd.f32 %v3437, %v3449
    %v3451 = vpop.f32.mrf.mxu0
    %3452 = vdwg.mxu0
    %3453 = vst [vmem:[%s5] sm:$0xff] %v3450
    // Predicated region
    $region34: #{textcnn_forward.1} parent=1 // pred_check
      _
    $region35: #{textcnn_forward.1} parent=1 // pred_check_branch
      %3455 = sbr.rel (0) target = $region37
    $region36: #{textcnn_forward.1} parent=1 // pred_region
      _
    $region37: #{textcnn_forward.1} parent=1 // pred_fallthru
      _
    // Predicated region
    $region38: #{textcnn_forward.1} parent=1 // pred_check
      _
    $region39: #{textcnn_forward.1} parent=1 // pred_check_branch
      %3457 = sbr.rel (0) target = $region41
    $region40: #{textcnn_forward.1} parent=1 // pred_region
      _
    $region41: #{textcnn_forward.1} parent=1 // pred_fallthru
      _
    %3458 = vsyncpa [#allocation3], 1
    %3459 = vsyncpa [#allocation5], 1

</llo_original>
